<compile_context>
chip_gen: v7x
topology: tpu7x:2x2x1
jax: 0.10.0
libtpu: 0.0.40
codegen_flags: <defaults>
</compile_context>

<pallas_src>
import functools

import numpy as np
import jax
import jax.numpy as jnp
from jax.experimental import pallas as pl
from jax.experimental.pallas import tpu as pltpu


# ---------------- weight construction (host side, cached numpy) -------------

@functools.lru_cache(maxsize=None)
def _aa_bilinear_weights(in_size: int, out_size: int) -> np.ndarray:
    """Anti-aliased bilinear (triangle filter) resize weights matching
    torchvision/PIL antialias=True semantics.  Shape (out_size, in_size), f32."""
    scale = in_size / out_size
    filterscale = max(scale, 1.0)
    support = filterscale  # bilinear filter support = 1
    W = np.zeros((out_size, in_size), dtype=np.float64)
    for i in range(out_size):
        center = (i + 0.5) * scale
        xmin = max(0, int(center - support + 0.5))
        xmax = min(in_size, int(center + support + 0.5))
        js = np.arange(xmin, xmax, dtype=np.float64)
        w = np.clip(1.0 - np.abs((js + 0.5 - center) / filterscale), 0.0, None)
        s = w.sum()
        if s > 0:
            w /= s
        W[i, xmin:xmax] = w
    return W.astype(np.float32)


# ------------------------------- kernel ----------------------------------

def _make_resize_kernel(height_first: bool):
    """Kernel over a (TC, H_in, W_in) input block -> (TC, H_out, W_pad) output.

    Each plane is resized with two natural-layout MXU matmuls (weight on LHS
    for the H contraction, transposed weight on RHS for the W contraction),
    so no in-kernel transposes/relayouts are needed and the output is stored
    lane-dense.
    """

    def kernel(img_ref, wh_ref, ww_ref, out_ref):
        tc = img_ref.shape[0]
        wh = wh_ref[...]                      # (H_out, H_in)  bf16
        ww = ww_ref[...]                      # (W_in, W_pad)  bf16

        out_dtype = out_ref.dtype
        is_int_out = jnp.issubdtype(out_dtype, jnp.integer)
        if is_int_out:
            info = jnp.iinfo(out_dtype)
            lo = np.float32(info.min)
            hi = np.float32(info.max)
            # Clamp bounds must be representable in f32 and inside the int range.
            if float(lo) < info.min:
                lo = np.nextafter(lo, np.float32(0.0))
            if float(hi) > info.max:
                hi = np.nextafter(hi, np.float32(0.0))
            lo_f, hi_f = float(lo), float(hi)

        def to_bf16(x):
            if jnp.issubdtype(x.dtype, jnp.integer):
                x = x.astype(jnp.float32)     # widest-supported convert chain
            return x.astype(jnp.bfloat16)

        # Static unroll over the batched planes: per-plane GEMM pairs in natural
        # MXU layouts (trades a little MXU drain for zero relayout copies).
        for b in range(tc):
            xb = to_bf16(img_ref[b])                                           # (H_in, W_in)
            if height_first:
                t = jnp.dot(wh, xb, preferred_element_type=jnp.float32)        # (H_out, W_in)
                y = jnp.dot(t.astype(jnp.bfloat16), ww,
                            preferred_element_type=jnp.float32)                # (H_out, W_pad)
            else:
                t = jnp.dot(xb, ww, preferred_element_type=jnp.float32)        # (H_in, W_pad)
                y = jnp.dot(wh, t.astype(jnp.bfloat16),
                            preferred_element_type=jnp.float32)                # (H_out, W_pad)

            if is_int_out:
                # Round half away from zero (PIL/torchvision uint8 semantics).
                y = jnp.where(y >= 0.0, jnp.floor(y + 0.5), jnp.ceil(y - 0.5))
                y = jnp.clip(y, lo_f, hi_f)
                y = y.astype(jnp.int32)       # f32 -> i32 -> narrow int (safe chain)
            out_ref[b] = y.astype(out_dtype)  # lane-dense store (W_pad aligned)

    return kernel


# ------------------------------- wrapper ----------------------------------

def _round_up(x: int, m: int) -> int:
    return (x + m - 1) // m * m


def _device_kind() -> str:
    try:
        return jax.devices()[0].device_kind.lower()
    except Exception:
        return ""


def _vmem_capacity_bytes() -> int:
    kind = _device_kind()
    cap = 0
    try:
        cap = int(pltpu.get_tpu_info().vmem_capacity_bytes)
    except Exception:
        cap = 0
    if cap <= 0:
        cap = (64 << 20) if "v7" in kind else (128 << 20)
    if "v7" in kind:
        cap = min(cap, 64 << 20)   # v7x: 64 MiB per TensorCore
    return cap


def _num_tensorcores() -> int:
    kind = _device_kind()
    # v7x has 2 TensorCores per chip; v4/v5p megacore parts also expose 2.
    return 2 if any(t in kind for t in ("v7", "v4", "v5p")) else 1


def pallas_resize(image: jax.Array, imshape) -> jax.Array:
    """image: (N, C, H_in, W_in) -> (N, C, H_out, W_out), antialiased bilinear.

    The image is kept in its input dtype end-to-end (HBM traffic dominates for
    downscaling); the kernel casts each plane to bf16 right before the MXU.
    """
    N, C, H_in, W_in = image.shape
    H_out, W_out = int(imshape[0]), int(imshape[1])
    NC = N * C

    # --- lane-dense output: pad W_out to a multiple of 128 (always when
    #     W_out < 128, otherwise only if the overhead stays small) ---
    W_pad = W_out
    if W_out % 128 != 0:
        cand = _round_up(W_out, 128)
        if W_out < 128 or cand <= int(1.3 * W_out):
            W_pad = cand

    # --- contraction order: pick the cheaper one (MXU FLOPs per plane) ---
    flops_h_first = H_out * W_in * (H_in + W_pad)
    flops_w_first = H_in * W_pad * (W_in + H_out)
    height_first = flops_h_first <= flops_w_first

    # --- weights: A_h (H_out, H_in) and A_w^T (W_in, W_pad), bf16 on device ---
    a_h = _aa_bilinear_weights(H_in, H_out)
    a_w_t = _aa_bilinear_weights(W_in, W_out).T
    if W_pad > W_out:
        a_w_t = np.pad(a_w_t, ((0, 0), (0, W_pad - W_out)))
    wh = jnp.asarray(a_h, dtype=jnp.bfloat16)      # (H_out, H_in)
    ww = jnp.asarray(a_w_t, dtype=jnp.bfloat16)    # (W_in, W_pad)

    # --- generation-aware VMEM budget / limit ---
    vmem_cap = _vmem_capacity_bytes()
    if vmem_cap <= (64 << 20):                     # v7x-class: tight physical VMEM
        budget = int(0.40 * vmem_cap)
        vmem_limit = int(0.75 * vmem_cap)
    else:                                          # v5e / v6e: 128 MiB, go big
        budget = int(0.65 * vmem_cap)
        vmem_limit = int(0.80 * vmem_cap)

    itemsize = jnp.dtype(image.dtype).itemsize

    def _vmem_estimate(tc: int) -> int:
        io = 2 * tc * (H_in * W_in + H_out * W_pad) * itemsize     # double-buffered blocks
        wts = 2 * (H_out * H_in + W_in * W_pad) * 2                # bf16 weights (conservative x2)
        plane = (H_in * W_in * 2
                 + max(H_out * W_in, H_in * W_pad) * 4
                 + H_out * W_pad * 4)                              # per-plane intermediates
        return io + wts + 2 * plane

    # --- TC (planes per grid step): no divisor constraint (NC is padded).
    #     Prefer a core-balanced number of grid steps on 2-TC parts, then the
    #     least padding waste, then the largest block.  The 64 cap only bounds
    #     the unrolled per-plane loop (compile time); VMEM usually binds first.
    n_cores = _num_tensorcores()
    feasible = [d for d in range(1, min(NC, 64) + 1) if _vmem_estimate(d) <= budget]
    if not feasible:
        feasible = [1]

    def _score(tc: int):
        steps = pl.cdiv(NC, tc)
        waste = steps * tc - NC
        if n_cores > 1:
            balanced = (steps >= n_cores) and (steps % n_cores == 0)
        else:
            balanced = True
        return (balanced, -waste, tc)

    TC = max(feasible, key=_score)
    steps = pl.cdiv(NC, TC)
    NC_pad = steps * TC

    vmem_limit = min(int(0.90 * vmem_cap),
                     max(vmem_limit, int(1.15 * _vmem_estimate(TC)), 32 << 20))

    img_flat = image.reshape(NC, H_in, W_in)
    if NC_pad != NC:
        img_flat = jnp.pad(img_flat, ((0, NC_pad - NC), (0, 0), (0, 0)))

    kernel = _make_resize_kernel(height_first)

    # TODO(synk): for very large frames, add an H_out band grid axis with a
    # scalar-prefetched start-row table and banded weight slabs (the dense GEMM
    # over-computes for strong downscales and a full plane may not fit v7x VMEM).
    def _call(use_buffered: bool):
        wkw = {"pipeline_mode": pl.Buffered(1)} if use_buffered else {}
        out = pl.pallas_call(
            kernel,
            out_shape=jax.ShapeDtypeStruct((NC_pad, H_out, W_pad), image.dtype),
            grid_spec=pltpu.PrefetchScalarGridSpec(
                num_scalar_prefetch=0,
                grid=(steps,),
                in_specs=[
                    pl.BlockSpec((TC, H_in, W_in), lambda i: (i, 0, 0)),
                    pl.BlockSpec(tuple(wh.shape), lambda i: (0, 0), **wkw),
                    pl.BlockSpec(tuple(ww.shape), lambda i: (0, 0), **wkw),
                ],
                out_specs=pl.BlockSpec((TC, H_out, W_pad), lambda i: (i, 0, 0)),
            ),
            compiler_params=pltpu.CompilerParams(
                dimension_semantics=("parallel",),
                vmem_limit_bytes=vmem_limit,
            ),
        )(img_flat, wh, ww)
        return jax.block_until_ready(out)

    try:
        out_flat = _call(True)      # single-buffer the constant weight blocks
    except Exception:
        out_flat = _call(False)     # fallback if this jaxlib rejects Buffered(1)

    if NC_pad != NC or W_pad != W_out:
        out_flat = out_flat[:NC, :, :W_out]
    return out_flat.reshape(N, C, H_out, W_out)


class Resize:
    """Pallas equivalent of the PyTorch Resize transform module."""

    def __init__(self, imshape):
        self.imshape = tuple(imshape)

    def __call__(self, batch):
        batch = dict(batch)
        batch["image"] = pallas_resize(batch["image"], self.imshape)
        return batch


if __name__ == "__main__":
    key = jax.random.PRNGKey(0)
    k1, k2, k3 = jax.random.split(key, 3)

    # --- float32, small square planes (height-first contraction order) ---
    N, C, H_in, W_in = 2, 3, 16, 16
    image = jax.random.uniform(k1, (N, C, H_in, W_in), dtype=jnp.float32)
    image_np = np.asarray(image)

    for imshape in [(8, 8), (4, 12)]:
        out = Resize(imshape)({"image": image})["image"]
        out = jax.block_until_ready(out)
        assert out.shape == (N, C, imshape[0], imshape[1]), out.shape
        assert out.dtype == jnp.float32, out.dtype
        a_h = _aa_bilinear_weights(H_in, imshape[0])
        a_w = _aa_bilinear_weights(W_in, imshape[1])
        ref = np.einsum("oh,nchw,pw->ncop", a_h, image_np, a_w)
        err = float(np.max(np.abs(np.asarray(out) - ref)))
        assert err < 0.05, f"max abs err {err} for imshape={imshape}"

    # --- wide planes (width-first contraction order) ---
    N2, C2, H2, W2 = 1, 3, 16, 256
    image2 = jax.random.uniform(k2, (N2, C2, H2, W2), dtype=jnp.float32)
    imshape2 = (64, 128)
    out2 = Resize(imshape2)({"image": image2})["image"]
    out2 = jax.block_until_ready(out2)
    assert out2.shape == (N2, C2, imshape2[0], imshape2[1]), out2.shape
    a_h2 = _aa_bilinear_weights(H2, imshape2[0])
    a_w2 = _aa_bilinear_weights(W2, imshape2[1])
    ref2 = np.einsum("oh,nchw,pw->ncop", a_h2, np.asarray(image2), a_w2)
    err2 = float(np.max(np.abs(np.asarray(out2) - ref2)))
    assert err2 < 0.05, f"max abs err {err2} for imshape={imshape2}"

    # --- uint8 input/output: narrow-dtype path + round/clamp semantics ---
    image_u8 = jax.random.randint(k3, (N, C, H_in, W_in), 0, 256,
                                  dtype=jnp.int32).astype(jnp.uint8)
    out_u8 = Resize((8, 8))({"image": image_u8})["image"]
    out_u8 = jax.block_until_ready(out_u8)
    assert out_u8.dtype == jnp.uint8 and out_u8.shape == (N, C, 8, 8), (out_u8.dtype, out_u8.shape)
    a_h3 = _aa_bilinear_weights(H_in, 8)
    a_w3 = _aa_bilinear_weights(W_in, 8)
    ref3 = np.einsum("oh,nchw,pw->ncop", a_h3,
                     np.asarray(image_u8).astype(np.float64), a_w3)
    ref3 = np.clip(np.floor(ref3 + 0.5), 0, 255)
    err3 = float(np.max(np.abs(np.asarray(out_u8).astype(np.float64) - ref3)))
    assert err3 <= 3.0, f"uint8 max abs err {err3}"

    print("KERNEL_OK")
</pallas_src>

<mosaic_0001>
module attributes {stable_mosaic.version = 11 : i64} {
  func.func @kernel(%arg0: i32, %arg1: memref<6x16x16xf32, #tpu.memory_space<vmem>>, %arg2: memref<8x16xbf16, #tpu.memory_space<vmem>>, %arg3: memref<16x128xbf16, #tpu.memory_space<vmem>>, %arg4: memref<6x8x128xf32, #tpu.memory_space<vmem>>) attributes {dimension_semantics = [#tpu.dimension_semantics<parallel>], iteration_bounds = array<i64: 1>, scalar_prefetch = 0 : i64, scratch_operands = 0 : i64, tpu.core_type = #tpu.core_type<tc>, window_params = [{transform_indices = @transform_0, window_bounds = array<i64: 6, 16, 16>}, {pipeline_mode = #tpu.pipeline_mode<synchronous>, transform_indices = @transform_1, window_bounds = array<i64: 8, 16>}, {pipeline_mode = #tpu.pipeline_mode<synchronous>, transform_indices = @transform_2, window_bounds = array<i64: 16, 128>}, {transform_indices = @transform_3, window_bounds = array<i64: 6, 8, 128>}]} {
    %c0 = arith.constant 0 : index
    %c0_0 = arith.constant 0 : index
    %0 = vector.load %arg2[%c0, %c0_0] : memref<8x16xbf16, #tpu.memory_space<vmem>>, vector<8x16xbf16>
    %c0_1 = arith.constant 0 : index
    %c0_2 = arith.constant 0 : index
    %1 = vector.load %arg3[%c0_1, %c0_2] : memref<16x128xbf16, #tpu.memory_space<vmem>>, vector<16x128xbf16>
    %c0_3 = arith.constant 0 : index
    %c0_4 = arith.constant 0 : index
    %c0_5 = arith.constant 0 : index
    %2 = vector.load %arg1[%c0_3, %c0_4, %c0_5] : memref<6x16x16xf32, #tpu.memory_space<vmem>>, vector<1x16x16xf32>
    %3 = vector.shape_cast %2 : vector<1x16x16xf32> to vector<16x16xf32>
    %4 = arith.truncf %3 : vector<16x16xf32> to vector<16x16xbf16>
    %cst = arith.constant dense<0.000000e+00> : vector<8x16xf32>
    %5 = tpu.matmul %0, %4, %cst {dimension_numbers = #tpu.dot_dimension_numbers<[1], [0], [0], [1], [0, 0, 1, 1], [], []>} : vector<8x16xbf16>, vector<16x16xbf16>, vector<8x16xf32> -> vector<8x16xf32>
    %6 = arith.truncf %5 : vector<8x16xf32> to vector<8x16xbf16>
    %cst_6 = arith.constant dense<0.000000e+00> : vector<8x128xf32>
    %7 = tpu.matmul %6, %1, %cst_6 {dimension_numbers = #tpu.dot_dimension_numbers<[1], [0], [0], [1], [0, 0, 1, 1], [], []>} : vector<8x16xbf16>, vector<16x128xbf16>, vector<8x128xf32> -> vector<8x128xf32>
    %c0_7 = arith.constant 0 : index
    %c0_8 = arith.constant 0 : index
    %c0_9 = arith.constant 0 : index
    %8 = vector.load %arg4[%c0_7, %c0_8, %c0_9] : memref<6x8x128xf32, #tpu.memory_space<vmem>>, vector<1x8x128xf32>
    %9 = vector.shape_cast %8 : vector<1x8x128xf32> to vector<8x128xf32>
    %10 = vector.shape_cast %7 : vector<8x128xf32> to vector<1x8x128xf32>
    tpu.vector_store %arg4[%c0_7, %c0_8, %c0_9], %10 {strides = array<i32>} : memref<6x8x128xf32, #tpu.memory_space<vmem>>, vector<1x8x128xf32>,
    %c1 = arith.constant 1 : index
    %c0_10 = arith.constant 0 : index
    %c0_11 = arith.constant 0 : index
    %11 = vector.load %arg1[%c1, %c0_10, %c0_11] : memref<6x16x16xf32, #tpu.memory_space<vmem>>, vector<1x16x16xf32>
    %12 = vector.shape_cast %11 : vector<1x16x16xf32> to vector<16x16xf32>
    %13 = arith.truncf %12 : vector<16x16xf32> to vector<16x16xbf16>
    %cst_12 = arith.constant dense<0.000000e+00> : vector<8x16xf32>
    %14 = tpu.matmul %0, %13, %cst_12 {dimension_numbers = #tpu.dot_dimension_numbers<[1], [0], [0], [1], [0, 0, 1, 1], [], []>} : vector<8x16xbf16>, vector<16x16xbf16>, vector<8x16xf32> -> vector<8x16xf32>
    %15 = arith.truncf %14 : vector<8x16xf32> to vector<8x16xbf16>
    %cst_13 = arith.constant dense<0.000000e+00> : vector<8x128xf32>
    %16 = tpu.matmul %15, %1, %cst_13 {dimension_numbers = #tpu.dot_dimension_numbers<[1], [0], [0], [1], [0, 0, 1, 1], [], []>} : vector<8x16xbf16>, vector<16x128xbf16>, vector<8x128xf32> -> vector<8x128xf32>
    %c1_14 = arith.constant 1 : index
    %c0_15 = arith.constant 0 : index
    %c0_16 = arith.constant 0 : index
    %17 = vector.load %arg4[%c1_14, %c0_15, %c0_16] : memref<6x8x128xf32, #tpu.memory_space<vmem>>, vector<1x8x128xf32>
    %18 = vector.shape_cast %17 : vector<1x8x128xf32> to vector<8x128xf32>
    %19 = vector.shape_cast %16 : vector<8x128xf32> to vector<1x8x128xf32>
    tpu.vector_store %arg4[%c1_14, %c0_15, %c0_16], %19 {strides = array<i32>} : memref<6x8x128xf32, #tpu.memory_space<vmem>>, vector<1x8x128xf32>,
    %c2 = arith.constant 2 : index
    %c0_17 = arith.constant 0 : index
    %c0_18 = arith.constant 0 : index
    %20 = vector.load %arg1[%c2, %c0_17, %c0_18] : memref<6x16x16xf32, #tpu.memory_space<vmem>>, vector<1x16x16xf32>
    %21 = vector.shape_cast %20 : vector<1x16x16xf32> to vector<16x16xf32>
    %22 = arith.truncf %21 : vector<16x16xf32> to vector<16x16xbf16>
    %cst_19 = arith.constant dense<0.000000e+00> : vector<8x16xf32>
    %23 = tpu.matmul %0, %22, %cst_19 {dimension_numbers = #tpu.dot_dimension_numbers<[1], [0], [0], [1], [0, 0, 1, 1], [], []>} : vector<8x16xbf16>, vector<16x16xbf16>, vector<8x16xf32> -> vector<8x16xf32>
    %24 = arith.truncf %23 : vector<8x16xf32> to vector<8x16xbf16>
    %cst_20 = arith.constant dense<0.000000e+00> : vector<8x128xf32>
    %25 = tpu.matmul %24, %1, %cst_20 {dimension_numbers = #tpu.dot_dimension_numbers<[1], [0], [0], [1], [0, 0, 1, 1], [], []>} : vector<8x16xbf16>, vector<16x128xbf16>, vector<8x128xf32> -> vector<8x128xf32>
    %c2_21 = arith.constant 2 : index
    %c0_22 = arith.constant 0 : index
    %c0_23 = arith.constant 0 : index
    %26 = vector.load %arg4[%c2_21, %c0_22, %c0_23] : memref<6x8x128xf32, #tpu.memory_space<vmem>>, vector<1x8x128xf32>
    %27 = vector.shape_cast %26 : vector<1x8x128xf32> to vector<8x128xf32>
    %28 = vector.shape_cast %25 : vector<8x128xf32> to vector<1x8x128xf32>
    tpu.vector_store %arg4[%c2_21, %c0_22, %c0_23], %28 {strides = array<i32>} : memref<6x8x128xf32, #tpu.memory_space<vmem>>, vector<1x8x128xf32>,
    %c3 = arith.constant 3 : index
    %c0_24 = arith.constant 0 : index
    %c0_25 = arith.constant 0 : index
    %29 = vector.load %arg1[%c3, %c0_24, %c0_25] : memref<6x16x16xf32, #tpu.memory_space<vmem>>, vector<1x16x16xf32>
    %30 = vector.shape_cast %29 : vector<1x16x16xf32> to vector<16x16xf32>
    %31 = arith.truncf %30 : vector<16x16xf32> to vector<16x16xbf16>
    %cst_26 = arith.constant dense<0.000000e+00> : vector<8x16xf32>
    %32 = tpu.matmul %0, %31, %cst_26 {dimension_numbers = #tpu.dot_dimension_numbers<[1], [0], [0], [1], [0, 0, 1, 1], [], []>} : vector<8x16xbf16>, vector<16x16xbf16>, vector<8x16xf32> -> vector<8x16xf32>
    %33 = arith.truncf %32 : vector<8x16xf32> to vector<8x16xbf16>
    %cst_27 = arith.constant dense<0.000000e+00> : vector<8x128xf32>
    %34 = tpu.matmul %33, %1, %cst_27 {dimension_numbers = #tpu.dot_dimension_numbers<[1], [0], [0], [1], [0, 0, 1, 1], [], []>} : vector<8x16xbf16>, vector<16x128xbf16>, vector<8x128xf32> -> vector<8x128xf32>
    %c3_28 = arith.constant 3 : index
    %c0_29 = arith.constant 0 : index
    %c0_30 = arith.constant 0 : index
    %35 = vector.load %arg4[%c3_28, %c0_29, %c0_30] : memref<6x8x128xf32, #tpu.memory_space<vmem>>, vector<1x8x128xf32>
    %36 = vector.shape_cast %35 : vector<1x8x128xf32> to vector<8x128xf32>
    %37 = vector.shape_cast %34 : vector<8x128xf32> to vector<1x8x128xf32>
    tpu.vector_store %arg4[%c3_28, %c0_29, %c0_30], %37 {strides = array<i32>} : memref<6x8x128xf32, #tpu.memory_space<vmem>>, vector<1x8x128xf32>,
    %c4 = arith.constant 4 : index
    %c0_31 = arith.constant 0 : index
    %c0_32 = arith.constant 0 : index
    %38 = vector.load %arg1[%c4, %c0_31, %c0_32] : memref<6x16x16xf32, #tpu.memory_space<vmem>>, vector<1x16x16xf32>
    %39 = vector.shape_cast %38 : vector<1x16x16xf32> to vector<16x16xf32>
    %40 = arith.truncf %39 : vector<16x16xf32> to vector<16x16xbf16>
    %cst_33 = arith.constant dense<0.000000e+00> : vector<8x16xf32>
    %41 = tpu.matmul %0, %40, %cst_33 {dimension_numbers = #tpu.dot_dimension_numbers<[1], [0], [0], [1], [0, 0, 1, 1], [], []>} : vector<8x16xbf16>, vector<16x16xbf16>, vector<8x16xf32> -> vector<8x16xf32>
    %42 = arith.truncf %41 : vector<8x16xf32> to vector<8x16xbf16>
    %cst_34 = arith.constant dense<0.000000e+00> : vector<8x128xf32>
    %43 = tpu.matmul %42, %1, %cst_34 {dimension_numbers = #tpu.dot_dimension_numbers<[1], [0], [0], [1], [0, 0, 1, 1], [], []>} : vector<8x16xbf16>, vector<16x128xbf16>, vector<8x128xf32> -> vector<8x128xf32>
    %c4_35 = arith.constant 4 : index
    %c0_36 = arith.constant 0 : index
    %c0_37 = arith.constant 0 : index
    %44 = vector.load %arg4[%c4_35, %c0_36, %c0_37] : memref<6x8x128xf32, #tpu.memory_space<vmem>>, vector<1x8x128xf32>
    %45 = vector.shape_cast %44 : vector<1x8x128xf32> to vector<8x128xf32>
    %46 = vector.shape_cast %43 : vector<8x128xf32> to vector<1x8x128xf32>
    tpu.vector_store %arg4[%c4_35, %c0_36, %c0_37], %46 {strides = array<i32>} : memref<6x8x128xf32, #tpu.memory_space<vmem>>, vector<1x8x128xf32>,
    %c5 = arith.constant 5 : index
    %c0_38 = arith.constant 0 : index
    %c0_39 = arith.constant 0 : index
    %47 = vector.load %arg1[%c5, %c0_38, %c0_39] : memref<6x16x16xf32, #tpu.memory_space<vmem>>, vector<1x16x16xf32>
    %48 = vector.shape_cast %47 : vector<1x16x16xf32> to vector<16x16xf32>
    %49 = arith.truncf %48 : vector<16x16xf32> to vector<16x16xbf16>
    %cst_40 = arith.constant dense<0.000000e+00> : vector<8x16xf32>
    %50 = tpu.matmul %0, %49, %cst_40 {dimension_numbers = #tpu.dot_dimension_numbers<[1], [0], [0], [1], [0, 0, 1, 1], [], []>} : vector<8x16xbf16>, vector<16x16xbf16>, vector<8x16xf32> -> vector<8x16xf32>
    %51 = arith.truncf %50 : vector<8x16xf32> to vector<8x16xbf16>
    %cst_41 = arith.constant dense<0.000000e+00> : vector<8x128xf32>
    %52 = tpu.matmul %51, %1, %cst_41 {dimension_numbers = #tpu.dot_dimension_numbers<[1], [0], [0], [1], [0, 0, 1, 1], [], []>} : vector<8x16xbf16>, vector<16x128xbf16>, vector<8x128xf32> -> vector<8x128xf32>
    %c5_42 = arith.constant 5 : index
    %c0_43 = arith.constant 0 : index
    %c0_44 = arith.constant 0 : index
    %53 = vector.load %arg4[%c5_42, %c0_43, %c0_44] : memref<6x8x128xf32, #tpu.memory_space<vmem>>, vector<1x8x128xf32>
    %54 = vector.shape_cast %53 : vector<1x8x128xf32> to vector<8x128xf32>
    %55 = vector.shape_cast %52 : vector<8x128xf32> to vector<1x8x128xf32>
    tpu.vector_store %arg4[%c5_42, %c0_43, %c0_44], %55 {strides = array<i32>} : memref<6x8x128xf32, #tpu.memory_space<vmem>>, vector<1x8x128xf32>,
    return
  }
  func.func @transform_0(%arg0: i32) -> (i32, i32, i32) {
    %c0_i32 = arith.constant 0 : i32
    %c0_i32_0 = arith.constant 0 : i32
    %c0_i32_1 = arith.constant 0 : i32
    return %arg0, %c0_i32, %c0_i32_0 : i32, i32, i32
  }
  func.func @transform_1(%arg0: i32) -> (i32, i32) {
    %c0_i32 = arith.constant 0 : i32
    %c0_i32_0 = arith.constant 0 : i32
    %c0_i32_1 = arith.constant 0 : i32
    return %c0_i32, %c0_i32_0 : i32, i32
  }
  func.func @transform_2(%arg0: i32) -> (i32, i32) {
    %c0_i32 = arith.constant 0 : i32
    %c0_i32_0 = arith.constant 0 : i32
    %c0_i32_1 = arith.constant 0 : i32
    return %c0_i32, %c0_i32_0 : i32, i32
  }
  func.func @transform_3(%arg0: i32) -> (i32, i32, i32) {
    %c0_i32 = arith.constant 0 : i32
    %c0_i32_0 = arith.constant 0 : i32
    %c0_i32_1 = arith.constant 0 : i32
    return %arg0, %c0_i32, %c0_i32_0 : i32, i32, i32
  }
}

module attributes {stable_mosaic.version = 11 : i64} {
  func.func @kernel(%arg0: i32, %arg1: memref<6x16x16xf32, #tpu.memory_space<vmem>>, %arg2: memref<8x16xbf16, #tpu.memory_space<vmem>>, %arg3: memref<16x128xbf16, #tpu.memory_space<vmem>>, %arg4: memref<6x8x128xf32, #tpu.memory_space<vmem>>) attributes {dimension_semantics = [#tpu.dimension_semantics<parallel>], iteration_bounds = array<i64: 1>, scalar_prefetch = 0 : i64, scratch_operands = 0 : i64, tpu.core_type = #tpu.core_type<tc>, window_params = [{transform_indices = @transform_0, window_bounds = array<i64: 6, 16, 16>}, {pipeline_mode = #tpu.pipeline_mode<synchronous>, transform_indices = @transform_1, window_bounds = array<i64: 8, 16>}, {pipeline_mode = #tpu.pipeline_mode<synchronous>, transform_indices = @transform_2, window_bounds = array<i64: 16, 128>}, {transform_indices = @transform_3, window_bounds = array<i64: 6, 8, 128>}]} {
    %c0 = arith.constant 0 : index
    %c0_0 = arith.constant 0 : index
    %0 = vector.load %arg2[%c0, %c0_0] : memref<8x16xbf16, #tpu.memory_space<vmem>>, vector<8x16xbf16>
    %c0_1 = arith.constant 0 : index
    %c0_2 = arith.constant 0 : index
    %1 = vector.load %arg3[%c0_1, %c0_2] : memref<16x128xbf16, #tpu.memory_space<vmem>>, vector<16x128xbf16>
    %c0_3 = arith.constant 0 : index
    %c0_4 = arith.constant 0 : index
    %c0_5 = arith.constant 0 : index
    %2 = vector.load %arg1[%c0_3, %c0_4, %c0_5] : memref<6x16x16xf32, #tpu.memory_space<vmem>>, vector<1x16x16xf32>
    %3 = vector.shape_cast %2 : vector<1x16x16xf32> to vector<16x16xf32>
    %4 = arith.truncf %3 : vector<16x16xf32> to vector<16x16xbf16>
    %cst = arith.constant dense<0.000000e+00> : vector<8x16xf32>
    %5 = tpu.matmul %0, %4, %cst {dimension_numbers = #tpu.dot_dimension_numbers<[1], [0], [0], [1], [0, 0, 1, 1], [], []>} : vector<8x16xbf16>, vector<16x16xbf16>, vector<8x16xf32> -> vector<8x16xf32>
    %6 = arith.truncf %5 : vector<8x16xf32> to vector<8x16xbf16>
    %cst_6 = arith.constant dense<0.000000e+00> : vector<8x128xf32>
    %7 = tpu.matmul %6, %1, %cst_6 {dimension_numbers = #tpu.dot_dimension_numbers<[1], [0], [0], [1], [0, 0, 1, 1], [], []>} : vector<8x16xbf16>, vector<16x128xbf16>, vector<8x128xf32> -> vector<8x128xf32>
    %c0_7 = arith.constant 0 : index
    %c0_8 = arith.constant 0 : index
    %c0_9 = arith.constant 0 : index
    %8 = vector.load %arg4[%c0_7, %c0_8, %c0_9] : memref<6x8x128xf32, #tpu.memory_space<vmem>>, vector<1x8x128xf32>
    %9 = vector.shape_cast %8 : vector<1x8x128xf32> to vector<8x128xf32>
    %10 = vector.shape_cast %7 : vector<8x128xf32> to vector<1x8x128xf32>
    tpu.vector_store %arg4[%c0_7, %c0_8, %c0_9], %10 {strides = array<i32>} : memref<6x8x128xf32, #tpu.memory_space<vmem>>, vector<1x8x128xf32>,
    %c1 = arith.constant 1 : index
    %c0_10 = arith.constant 0 : index
    %c0_11 = arith.constant 0 : index
    %11 = vector.load %arg1[%c1, %c0_10, %c0_11] : memref<6x16x16xf32, #tpu.memory_space<vmem>>, vector<1x16x16xf32>
    %12 = vector.shape_cast %11 : vector<1x16x16xf32> to vector<16x16xf32>
    %13 = arith.truncf %12 : vector<16x16xf32> to vector<16x16xbf16>
    %cst_12 = arith.constant dense<0.000000e+00> : vector<8x16xf32>
    %14 = tpu.matmul %0, %13, %cst_12 {dimension_numbers = #tpu.dot_dimension_numbers<[1], [0], [0], [1], [0, 0, 1, 1], [], []>} : vector<8x16xbf16>, vector<16x16xbf16>, vector<8x16xf32> -> vector<8x16xf32>
    %15 = arith.truncf %14 : vector<8x16xf32> to vector<8x16xbf16>
    %cst_13 = arith.constant dense<0.000000e+00> : vector<8x128xf32>
    %16 = tpu.matmul %15, %1, %cst_13 {dimension_numbers = #tpu.dot_dimension_numbers<[1], [0], [0], [1], [0, 0, 1, 1], [], []>} : vector<8x16xbf16>, vector<16x128xbf16>, vector<8x128xf32> -> vector<8x128xf32>
    %c1_14 = arith.constant 1 : index
    %c0_15 = arith.constant 0 : index
    %c0_16 = arith.constant 0 : index
    %17 = vector.load %arg4[%c1_14, %c0_15, %c0_16] : memref<6x8x128xf32, #tpu.memory_space<vmem>>, vector<1x8x128xf32>
    %18 = vector.shape_cast %17 : vector<1x8x128xf32> to vector<8x128xf32>
    %19 = vector.shape_cast %16 : vector<8x128xf32> to vector<1x8x128xf32>
    tpu.vector_store %arg4[%c1_14, %c0_15, %c0_16], %19 {strides = array<i32>} : memref<6x8x128xf32, #tpu.memory_space<vmem>>, vector<1x8x128xf32>,
    %c2 = arith.constant 2 : index
    %c0_17 = arith.constant 0 : index
    %c0_18 = arith.constant 0 : index
    %20 = vector.load %arg1[%c2, %c0_17, %c0_18] : memref<6x16x16xf32, #tpu.memory_space<vmem>>, vector<1x16x16xf32>
    %21 = vector.shape_cast %20 : vector<1x16x16xf32> to vector<16x16xf32>
    %22 = arith.truncf %21 : vector<16x16xf32> to vector<16x16xbf16>
    %cst_19 = arith.constant dense<0.000000e+00> : vector<8x16xf32>
    %23 = tpu.matmul %0, %22, %cst_19 {dimension_numbers = #tpu.dot_dimension_numbers<[1], [0], [0], [1], [0, 0, 1, 1], [], []>} : vector<8x16xbf16>, vector<16x16xbf16>, vector<8x16xf32> -> vector<8x16xf32>
    %24 = arith.truncf %23 : vector<8x16xf32> to vector<8x16xbf16>
    %cst_20 = arith.constant dense<0.000000e+00> : vector<8x128xf32>
    %25 = tpu.matmul %24, %1, %cst_20 {dimension_numbers = #tpu.dot_dimension_numbers<[1], [0], [0], [1], [0, 0, 1, 1], [], []>} : vector<8x16xbf16>, vector<16x128xbf16>, vector<8x128xf32> -> vector<8x128xf32>
    %c2_21 = arith.constant 2 : index
    %c0_22 = arith.constant 0 : index
    %c0_23 = arith.constant 0 : index
    %26 = vector.load %arg4[%c2_21, %c0_22, %c0_23] : memref<6x8x128xf32, #tpu.memory_space<vmem>>, vector<1x8x128xf32>
    %27 = vector.shape_cast %26 : vector<1x8x128xf32> to vector<8x128xf32>
    %28 = vector.shape_cast %25 : vector<8x128xf32> to vector<1x8x128xf32>
    tpu.vector_store %arg4[%c2_21, %c0_22, %c0_23], %28 {strides = array<i32>} : memref<6x8x128xf32, #tpu.memory_space<vmem>>, vector<1x8x128xf32>,
    %c3 = arith.constant 3 : index
    %c0_24 = arith.constant 0 : index
    %c0_25 = arith.constant 0 : index
    %29 = vector.load %arg1[%c3, %c0_24, %c0_25] : memref<6x16x16xf32, #tpu.memory_space<vmem>>, vector<1x16x16xf32>
    %30 = vector.shape_cast %29 : vector<1x16x16xf32> to vector<16x16xf32>
    %31 = arith.truncf %30 : vector<16x16xf32> to vector<16x16xbf16>
    %cst_26 = arith.constant dense<0.000000e+00> : vector<8x16xf32>
    %32 = tpu.matmul %0, %31, %cst_26 {dimension_numbers = #tpu.dot_dimension_numbers<[1], [0], [0], [1], [0, 0, 1, 1], [], []>} : vector<8x16xbf16>, vector<16x16xbf16>, vector<8x16xf32> -> vector<8x16xf32>
    %33 = arith.truncf %32 : vector<8x16xf32> to vector<8x16xbf16>
    %cst_27 = arith.constant dense<0.000000e+00> : vector<8x128xf32>
    %34 = tpu.matmul %33, %1, %cst_27 {dimension_numbers = #tpu.dot_dimension_numbers<[1], [0], [0], [1], [0, 0, 1, 1], [], []>} : vector<8x16xbf16>, vector<16x128xbf16>, vector<8x128xf32> -> vector<8x128xf32>
    %c3_28 = arith.constant 3 : index
    %c0_29 = arith.constant 0 : index
    %c0_30 = arith.constant 0 : index
    %35 = vector.load %arg4[%c3_28, %c0_29, %c0_30] : memref<6x8x128xf32, #tpu.memory_space<vmem>>, vector<1x8x128xf32>
    %36 = vector.shape_cast %35 : vector<1x8x128xf32> to vector<8x128xf32>
    %37 = vector.shape_cast %34 : vector<8x128xf32> to vector<1x8x128xf32>
    tpu.vector_store %arg4[%c3_28, %c0_29, %c0_30], %37 {strides = array<i32>} : memref<6x8x128xf32, #tpu.memory_space<vmem>>, vector<1x8x128xf32>,
    %c4 = arith.constant 4 : index
    %c0_31 = arith.constant 0 : index
    %c0_32 = arith.constant 0 : index
    %38 = vector.load %arg1[%c4, %c0_31, %c0_32] : memref<6x16x16xf32, #tpu.memory_space<vmem>>, vector<1x16x16xf32>
    %39 = vector.shape_cast %38 : vector<1x16x16xf32> to vector<16x16xf32>
    %40 = arith.truncf %39 : vector<16x16xf32> to vector<16x16xbf16>
    %cst_33 = arith.constant dense<0.000000e+00> : vector<8x16xf32>
    %41 = tpu.matmul %0, %40, %cst_33 {dimension_numbers = #tpu.dot_dimension_numbers<[1], [0], [0], [1], [0, 0, 1, 1], [], []>} : vector<8x16xbf16>, vector<16x16xbf16>, vector<8x16xf32> -> vector<8x16xf32>
    %42 = arith.truncf %41 : vector<8x16xf32> to vector<8x16xbf16>
    %cst_34 = arith.constant dense<0.000000e+00> : vector<8x128xf32>
    %43 = tpu.matmul %42, %1, %cst_34 {dimension_numbers = #tpu.dot_dimension_numbers<[1], [0], [0], [1], [0, 0, 1, 1], [], []>} : vector<8x16xbf16>, vector<16x128xbf16>, vector<8x128xf32> -> vector<8x128xf32>
    %c4_35 = arith.constant 4 : index
    %c0_36 = arith.constant 0 : index
    %c0_37 = arith.constant 0 : index
    %44 = vector.load %arg4[%c4_35, %c0_36, %c0_37] : memref<6x8x128xf32, #tpu.memory_space<vmem>>, vector<1x8x128xf32>
    %45 = vector.shape_cast %44 : vector<1x8x128xf32> to vector<8x128xf32>
    %46 = vector.shape_cast %43 : vector<8x128xf32> to vector<1x8x128xf32>
    tpu.vector_store %arg4[%c4_35, %c0_36, %c0_37], %46 {strides = array<i32>} : memref<6x8x128xf32, #tpu.memory_space<vmem>>, vector<1x8x128xf32>,
    %c5 = arith.constant 5 : index
    %c0_38 = arith.constant 0 : index
    %c0_39 = arith.constant 0 : index
    %47 = vector.load %arg1[%c5, %c0_38, %c0_39] : memref<6x16x16xf32, #tpu.memory_space<vmem>>, vector<1x16x16xf32>
    %48 = vector.shape_cast %47 : vector<1x16x16xf32> to vector<16x16xf32>
    %49 = arith.truncf %48 : vector<16x16xf32> to vector<16x16xbf16>
    %cst_40 = arith.constant dense<0.000000e+00> : vector<8x16xf32>
    %50 = tpu.matmul %0, %49, %cst_40 {dimension_numbers = #tpu.dot_dimension_numbers<[1], [0], [0], [1], [0, 0, 1, 1], [], []>} : vector<8x16xbf16>, vector<16x16xbf16>, vector<8x16xf32> -> vector<8x16xf32>
    %51 = arith.truncf %50 : vector<8x16xf32> to vector<8x16xbf16>
    %cst_41 = arith.constant dense<0.000000e+00> : vector<8x128xf32>
    %52 = tpu.matmul %51, %1, %cst_41 {dimension_numbers = #tpu.dot_dimension_numbers<[1], [0], [0], [1], [0, 0, 1, 1], [], []>} : vector<8x16xbf16>, vector<16x128xbf16>, vector<8x128xf32> -> vector<8x128xf32>
    %c5_42 = arith.constant 5 : index
    %c0_43 = arith.constant 0 : index
    %c0_44 = arith.constant 0 : index
    %53 = vector.load %arg4[%c5_42, %c0_43, %c0_44] : memref<6x8x128xf32, #tpu.memory_space<vmem>>, vector<1x8x128xf32>
    %54 = vector.shape_cast %53 : vector<1x8x128xf32> to vector<8x128xf32>
    %55 = vector.shape_cast %52 : vector<8x128xf32> to vector<1x8x128xf32>
    tpu.vector_store %arg4[%c5_42, %c0_43, %c0_44], %55 {strides = array<i32>} : memref<6x8x128xf32, #tpu.memory_space<vmem>>, vector<1x8x128xf32>,
    return
  }
  func.func @transform_0(%arg0: i32) -> (i32, i32, i32) {
    %c0_i32 = arith.constant 0 : i32
    %c0_i32_0 = arith.constant 0 : i32
    %c0_i32_1 = arith.constant 0 : i32
    return %arg0, %c0_i32, %c0_i32_0 : i32, i32, i32
  }
  func.func @transform_1(%arg0: i32) -> (i32, i32) {
    %c0_i32 = arith.constant 0 : i32
    %c0_i32_0 = arith.constant 0 : i32
    %c0_i32_1 = arith.constant 0 : i32
    return %c0_i32, %c0_i32_0 : i32, i32
  }
  func.func @transform_2(%arg0: i32) -> (i32, i32) {
    %c0_i32 = arith.constant 0 : i32
    %c0_i32_0 = arith.constant 0 : i32
    %c0_i32_1 = arith.constant 0 : i32
    return %c0_i32, %c0_i32_0 : i32, i32
  }
  func.func @transform_3(%arg0: i32) -> (i32, i32, i32) {
    %c0_i32 = arith.constant 0 : i32
    %c0_i32_0 = arith.constant 0 : i32
    %c0_i32_1 = arith.constant 0 : i32
    return %arg0, %c0_i32, %c0_i32_0 : i32, i32, i32
  }
}

</mosaic_0001>

<llo_original>
// kernel: tpu_custom_call.1
$region0: #{tpu_custom_call.1}
  #allocation0 [shape = 'u32[]', space=smem, size = 0x4, offset = 0x4, fixed_abs, tag = 'smem constant byte address 0x4 - core index']
  #allocation1 [shape = 'u32[144,128]{1,0:T(1,128)}', space=vmem, size = 0x12000, scoped, tag = 'internal scratch']
  %s0 = inlined_call_operand.hbm [shape: f32[6,16,16], index: 0, kind: input, shape index: {}]
  %s1 = inlined_call_operand.hbm [shape: bf16[8,16], index: 1, kind: input, shape index: {}]
  %s2 = inlined_call_operand.hbm [shape: bf16[16,128], index: 2, kind: input, shape index: {}]
  %s3 = inlined_call_operand.hbm [shape: f32[6,8,128], index: 3, kind: output, shape index: {}]
  %s4 = sld [smem:[#allocation0]]
  $region34: #{tpu_custom_call.1} parent=0
    _
  %s6 = ssub.s32 1, %s4
  %s7 = scalar_select 0, %s6, %s4
  $region1: #{tpu_custom_call.1} parent=0
    #allocation2 [shape = 'u8[49152]{0}', space=vmem, size = 0xc000, scoped, tag = 'input window, operand 0, single buffered']
    #allocation3 [shape = 's32[1]{0}', space=sflag, size = 0x4, scoped, tag = 'scoped memory for tpu_custom_call.1']
    #allocation4 [shape = 's32[1]{0}', space=sflag, size = 0x4, scoped, tag = 'scoped memory for tpu_custom_call.1']
    #allocation5 [shape = 'u8[2048]{0}', space=vmem, size = 0x800, scoped, tag = 'input window, operand 1, single buffered']
    #allocation6 [shape = 's32[1]{0}', space=sflag, size = 0x4, scoped, tag = 'scoped memory for tpu_custom_call.1']
    #allocation7 [shape = 'u8[4096]{0}', space=vmem, size = 0x1000, scoped, tag = 'input window, operand 2, single buffered']
    #allocation8 [shape = 'u8[24576]{0}', space=vmem, size = 0x6000, scoped, tag = 'output window, operand 0, single buffered']
    %8 = vsyncpa [#allocation3], 0
    %9 = vsyncpa [#allocation6], 0
    %10 = vsyncpa [#allocation4], 0
    // Predicated region
    $region2: #{tpu_custom_call.1} parent=1 // pred_check
      _
    $region3: #{tpu_custom_call.1} parent=1 // pred_check_branch
      %12 = sbr.rel (0) target = $region5
    $region4: #{tpu_custom_call.1} parent=1 // pred_region
      %s14 = ssub.s32 1536, 1536
      %15 = vsyncadd [#allocation3], %s14
      %s16 = sshll.u32 [#allocation2], 4
      %s17 = int_to_ptr.vmem [resolvable:$true] %s16
      %22 = dma.hbm_to_vmem [thread:$0]  %s0, 1536, %s17, [#allocation3], 128, 128, 8
    $region5: #{tpu_custom_call.1} parent=1 // pred_fallthru
      _
    // Predicated region
    $region6: #{tpu_custom_call.1} parent=1 // pred_check
      _
    $region7: #{tpu_custom_call.1} parent=1 // pred_check_branch
      %24 = sbr.rel (0) target = $region9
    $region8: #{tpu_custom_call.1} parent=1 // pred_region
      %s26 = ssub.s32 64, 64
      %27 = vsyncadd [#allocation6], %s26
      %s29 = sshll.u32 [#allocation5], 4
      %s30 = int_to_ptr.vmem [resolvable:$true] %s29
      %32 = dma.hbm_to_vmem [thread:$0]  %s1, 64, %s30, [#allocation6]
    $region9: #{tpu_custom_call.1} parent=1 // pred_fallthru
      _
    // Predicated region
    $region10: #{tpu_custom_call.1} parent=1 // pred_check
      _
    $region11: #{tpu_custom_call.1} parent=1 // pred_check_branch
      %34 = sbr.rel (0) target = $region13
    $region12: #{tpu_custom_call.1} parent=1 // pred_region
      %s36 = ssub.s32 128, 128
      %37 = vsyncadd [#allocation6], %s36
      %s38 = sshll.u32 [#allocation7], 4
      %s39 = int_to_ptr.vmem [resolvable:$true] %s38
      %44 = dma.hbm_to_vmem [thread:$0]  %s2, 128, %s39, [#allocation6], 64, 64, 4
    $region13: #{tpu_custom_call.1} parent=1 // pred_fallthru
      _
    // Predicated region
    $region14: #{tpu_custom_call.1} parent=1 // pred_check
      _
    $region15: #{tpu_custom_call.1} parent=1 // pred_check_branch
      %46 = sbr.rel (0) target = $region17
    $region16: #{tpu_custom_call.1} parent=1 // pred_region
      %47 = dma.done [#allocation3], 1536
    $region17: #{tpu_custom_call.1} parent=1 // pred_fallthru
      _
    // Predicated region
    $region18: #{tpu_custom_call.1} parent=1 // pred_check
      _
    $region19: #{tpu_custom_call.1} parent=1 // pred_check_branch
      %49 = sbr.rel (0) target = $region21
    $region20: #{tpu_custom_call.1} parent=1 // pred_region
      %50 = dma.done [#allocation6], 64
    $region21: #{tpu_custom_call.1} parent=1 // pred_fallthru
      _
    // Predicated region
    $region22: #{tpu_custom_call.1} parent=1 // pred_check
      _
    $region23: #{tpu_custom_call.1} parent=1 // pred_check_branch
      %52 = sbr.rel (0) target = $region25
    $region24: #{tpu_custom_call.1} parent=1 // pred_region
      %53 = dma.done [#allocation6], 128
    $region25: #{tpu_custom_call.1} parent=1 // pred_fallthru
      _
    %v55 = vld [vmem:[#allocation5] sm:$0xf]
    %v56 = vld [vmem:[#allocation7] sm:$0xf]
    %v57 = vld [vmem:[#allocation7 + $0x4] sm:$0xf]
    %v58 = vld [vmem:[#allocation2] sm:$0xff]
    %v59 = vld [vmem:[#allocation2 + $0x8] sm:$0xff]
    %v60 = vpack.c.bf16 %v59, %v58
    %vm61 = vcmask 130048
    %v63 = vsel %vm61, %v55, 0
    %65 = vmatprep.subr.bf16.mxu0 0
    %66 = vmatpush1.bf16.msra.mxu0 %v60
    %67 = vmatprep.subr.bf16.mxu0 0
    %68 = vmatpush1.bf16.msra.mxu0 0
    %69 = vmatprep.subr.bf16.mxu0 0
    %70 = vmatpush1.bf16.msra.mxu0 0
    %71 = vmatprep.subr.bf16.mxu0 0
    %72 = vmatpush1.bf16.msra.mxu0 0
    %73 = vmatprep.subr.bf16.mxu0 0
    %74 = vmatpush1.bf16.msra.mxu0 0
    %75 = vmatprep.subr.bf16.mxu0 0
    %76 = vmatpush1.bf16.msra.mxu0 0
    %77 = vmatprep.subr.bf16.mxu0 0
    %78 = vmatpush1.bf16.msra.mxu0 0
    %79 = vmatprep.subr.bf16.mxu0 0
    %80 = vmatpush1.bf16.msra.mxu0 0
    %81 = vmatprep.subr.bf16.mxu0 0
    %82 = vmatpush1.bf16.msra.mxu0 0
    %83 = vmatprep.subr.bf16.mxu0 0
    %84 = vmatpush1.bf16.msra.mxu0 0
    %85 = vmatprep.subr.bf16.mxu0 0
    %86 = vmatpush1.bf16.msra.mxu0 0
    %87 = vmatprep.subr.bf16.mxu0 0
    %88 = vmatpush1.bf16.msra.mxu0 0
    %89 = vmatprep.subr.bf16.mxu0 0
    %90 = vmatpush1.bf16.msra.mxu0 0
    %91 = vmatprep.subr.bf16.mxu0 0
    %92 = vmatpush1.bf16.msra.mxu0 0
    %93 = vmatprep.subr.bf16.mxu0 0
    %94 = vmatpush1.bf16.msra.mxu0 0
    %95 = vmatprep.subr.bf16.mxu0 0
    %96 = vmatpush1.bf16.msra.mxu0 0
    %97 = vmatprep.mubr.bf16.mxu0 0
    %98 = vmatmul.mubr.bf16.gmra.mrb[0].mxu0 %v63
    %v99 = vpop.f32.mrb[0].mxu0
    %v100 = vadd.f32 0.0, %v99
    %v101 = vpop.f32.mrb[0].mxu0
    %v102 = vpop.f32.mrb[0].mxu0
    %v103 = vpop.f32.mrb[0].mxu0
    %104 = vdwg.mxu0
    %v105 = vpack.c.bf16 %v100, %v100
    %v108 = vunpack.c.l.b16 %v56
    %v109 = vunpack.c.l.b16 %v57
    %v110 = vpack.c.b16 %v109, %v108
    %v113 = vsel %vm61, %v105, 0
    %115 = vmatprep.subr.bf16.mxu0 0
    %116 = vmatpush1.bf16.msra.mxu0 %v110
    %117 = vmatprep.subr.bf16.mxu0 0
    %118 = vmatpush1.bf16.msra.mxu0 0
    %119 = vmatprep.subr.bf16.mxu0 0
    %120 = vmatpush1.bf16.msra.mxu0 0
    %121 = vmatprep.subr.bf16.mxu0 0
    %122 = vmatpush1.bf16.msra.mxu0 0
    %123 = vmatprep.subr.bf16.mxu0 0
    %124 = vmatpush1.bf16.msra.mxu0 0
    %125 = vmatprep.subr.bf16.mxu0 0
    %126 = vmatpush1.bf16.msra.mxu0 0
    %127 = vmatprep.subr.bf16.mxu0 0
    %128 = vmatpush1.bf16.msra.mxu0 0
    %129 = vmatprep.subr.bf16.mxu0 0
    %130 = vmatpush1.bf16.msra.mxu0 0
    %131 = vmatprep.subr.bf16.mxu0 0
    %132 = vmatpush1.bf16.msra.mxu0 0
    %133 = vmatprep.subr.bf16.mxu0 0
    %134 = vmatpush1.bf16.msra.mxu0 0
    %135 = vmatprep.subr.bf16.mxu0 0
    %136 = vmatpush1.bf16.msra.mxu0 0
    %137 = vmatprep.subr.bf16.mxu0 0
    %138 = vmatpush1.bf16.msra.mxu0 0
    %139 = vmatprep.subr.bf16.mxu0 0
    %140 = vmatpush1.bf16.msra.mxu0 0
    %141 = vmatprep.subr.bf16.mxu0 0
    %142 = vmatpush1.bf16.msra.mxu0 0
    %143 = vmatprep.subr.bf16.mxu0 0
    %144 = vmatpush1.bf16.msra.mxu0 0
    %145 = vmatprep.subr.bf16.mxu0 0
    %146 = vmatpush1.bf16.msra.mxu0 0
    %147 = vmatprep.mubr.bf16.mxu0 0
    %148 = vmatmul.mubr.bf16.gmra.mrb[0].mxu0 %v113
    %v149 = vpop.f32.mrb[0].mxu0
    %v150 = vadd.f32 0.0, %v149
    %v151 = vpop.f32.mrb[0].mxu0
    %v152 = vpop.f32.mrb[0].mxu0
    %v153 = vpop.f32.mrb[0].mxu0
    %154 = vdwg.mxu0
    %155 = vst [vmem:[#allocation8] sm:$0xff] %v150
    %s156 = scalar_lea.vmem [#allocation2], 16
    %v157 = vld [vmem:[%s156] sm:$0xff]
    %v158 = vld [vmem:[%s156 + $0x8] sm:$0xff]
    %v159 = vpack.c.bf16 %v158, %v157
    %160 = vmatprep.subr.bf16.mxu0 0
    %161 = vmatpush1.bf16.msra.mxu0 %v159
    %162 = vmatprep.subr.bf16.mxu0 0
    %163 = vmatpush1.bf16.msra.mxu0 0
    %164 = vmatprep.subr.bf16.mxu0 0
    %165 = vmatpush1.bf16.msra.mxu0 0
    %166 = vmatprep.subr.bf16.mxu0 0
    %167 = vmatpush1.bf16.msra.mxu0 0
    %168 = vmatprep.subr.bf16.mxu0 0
    %169 = vmatpush1.bf16.msra.mxu0 0
    %170 = vmatprep.subr.bf16.mxu0 0
    %171 = vmatpush1.bf16.msra.mxu0 0
    %172 = vmatprep.subr.bf16.mxu0 0
    %173 = vmatpush1.bf16.msra.mxu0 0
    %174 = vmatprep.subr.bf16.mxu0 0
    %175 = vmatpush1.bf16.msra.mxu0 0
    %176 = vmatprep.subr.bf16.mxu0 0
    %177 = vmatpush1.bf16.msra.mxu0 0
    %178 = vmatprep.subr.bf16.mxu0 0
    %179 = vmatpush1.bf16.msra.mxu0 0
    %180 = vmatprep.subr.bf16.mxu0 0
    %181 = vmatpush1.bf16.msra.mxu0 0
    %182 = vmatprep.subr.bf16.mxu0 0
    %183 = vmatpush1.bf16.msra.mxu0 0
    %184 = vmatprep.subr.bf16.mxu0 0
    %185 = vmatpush1.bf16.msra.mxu0 0
    %186 = vmatprep.subr.bf16.mxu0 0
    %187 = vmatpush1.bf16.msra.mxu0 0
    %188 = vmatprep.subr.bf16.mxu0 0
    %189 = vmatpush1.bf16.msra.mxu0 0
    %190 = vmatprep.subr.bf16.mxu0 0
    %191 = vmatpush1.bf16.msra.mxu0 0
    %192 = vmatprep.mubr.bf16.mxu0 0
    %193 = vmatmul.mubr.bf16.gmra.mrb[0].mxu0 %v63
    %v194 = vpop.f32.mrb[0].mxu0
    %v195 = vadd.f32 0.0, %v194
    %v196 = vpop.f32.mrb[0].mxu0
    %v197 = vpop.f32.mrb[0].mxu0
    %v198 = vpop.f32.mrb[0].mxu0
    %199 = vdwg.mxu0
    %v200 = vpack.c.bf16 %v195, %v195
    %v202 = vsel %vm61, %v200, 0
    %204 = vmatprep.subr.bf16.mxu0 0
    %205 = vmatpush1.bf16.msra.mxu0 %v110
    %206 = vmatprep.subr.bf16.mxu0 0
    %207 = vmatpush1.bf16.msra.mxu0 0
    %208 = vmatprep.subr.bf16.mxu0 0
    %209 = vmatpush1.bf16.msra.mxu0 0
    %210 = vmatprep.subr.bf16.mxu0 0
    %211 = vmatpush1.bf16.msra.mxu0 0
    %212 = vmatprep.subr.bf16.mxu0 0
    %213 = vmatpush1.bf16.msra.mxu0 0
    %214 = vmatprep.subr.bf16.mxu0 0
    %215 = vmatpush1.bf16.msra.mxu0 0
    %216 = vmatprep.subr.bf16.mxu0 0
    %217 = vmatpush1.bf16.msra.mxu0 0
    %218 = vmatprep.subr.bf16.mxu0 0
    %219 = vmatpush1.bf16.msra.mxu0 0
    %220 = vmatprep.subr.bf16.mxu0 0
    %221 = vmatpush1.bf16.msra.mxu0 0
    %222 = vmatprep.subr.bf16.mxu0 0
    %223 = vmatpush1.bf16.msra.mxu0 0
    %224 = vmatprep.subr.bf16.mxu0 0
    %225 = vmatpush1.bf16.msra.mxu0 0
    %226 = vmatprep.subr.bf16.mxu0 0
    %227 = vmatpush1.bf16.msra.mxu0 0
    %228 = vmatprep.subr.bf16.mxu0 0
    %229 = vmatpush1.bf16.msra.mxu0 0
    %230 = vmatprep.subr.bf16.mxu0 0
    %231 = vmatpush1.bf16.msra.mxu0 0
    %232 = vmatprep.subr.bf16.mxu0 0
    %233 = vmatpush1.bf16.msra.mxu0 0
    %234 = vmatprep.subr.bf16.mxu0 0
    %235 = vmatpush1.bf16.msra.mxu0 0
    %236 = vmatprep.mubr.bf16.mxu0 0
    %237 = vmatmul.mubr.bf16.gmra.mrb[0].mxu0 %v202
    %v238 = vpop.f32.mrb[0].mxu0
    %v239 = vadd.f32 0.0, %v238
    %v240 = vpop.f32.mrb[0].mxu0
    %v241 = vpop.f32.mrb[0].mxu0
    %v242 = vpop.f32.mrb[0].mxu0
    %243 = vdwg.mxu0
    %s244 = scalar_lea.vmem [#allocation8], 8
    %245 = vst [vmem:[%s244] sm:$0xff] %v239
    %s246 = scalar_lea.vmem [#allocation2], 32
    %v247 = vld [vmem:[%s246] sm:$0xff]
    %v248 = vld [vmem:[%s246 + $0x8] sm:$0xff]
    %v249 = vpack.c.bf16 %v248, %v247
    %250 = vmatprep.subr.bf16.mxu0 0
    %251 = vmatpush1.bf16.msra.mxu0 %v249
    %252 = vmatprep.subr.bf16.mxu0 0
    %253 = vmatpush1.bf16.msra.mxu0 0
    %254 = vmatprep.subr.bf16.mxu0 0
    %255 = vmatpush1.bf16.msra.mxu0 0
    %256 = vmatprep.subr.bf16.mxu0 0
    %257 = vmatpush1.bf16.msra.mxu0 0
    %258 = vmatprep.subr.bf16.mxu0 0
    %259 = vmatpush1.bf16.msra.mxu0 0
    %260 = vmatprep.subr.bf16.mxu0 0
    %261 = vmatpush1.bf16.msra.mxu0 0
    %262 = vmatprep.subr.bf16.mxu0 0
    %263 = vmatpush1.bf16.msra.mxu0 0
    %264 = vmatprep.subr.bf16.mxu0 0
    %265 = vmatpush1.bf16.msra.mxu0 0
    %266 = vmatprep.subr.bf16.mxu0 0
    %267 = vmatpush1.bf16.msra.mxu0 0
    %268 = vmatprep.subr.bf16.mxu0 0
    %269 = vmatpush1.bf16.msra.mxu0 0
    %270 = vmatprep.subr.bf16.mxu0 0
    %271 = vmatpush1.bf16.msra.mxu0 0
    %272 = vmatprep.subr.bf16.mxu0 0
    %273 = vmatpush1.bf16.msra.mxu0 0
    %274 = vmatprep.subr.bf16.mxu0 0
    %275 = vmatpush1.bf16.msra.mxu0 0
    %276 = vmatprep.subr.bf16.mxu0 0
    %277 = vmatpush1.bf16.msra.mxu0 0
    %278 = vmatprep.subr.bf16.mxu0 0
    %279 = vmatpush1.bf16.msra.mxu0 0
    %280 = vmatprep.subr.bf16.mxu0 0
    %281 = vmatpush1.bf16.msra.mxu0 0
    %282 = vmatprep.mubr.bf16.mxu0 0
    %283 = vmatmul.mubr.bf16.gmra.mrb[0].mxu0 %v63
    %v284 = vpop.f32.mrb[0].mxu0
    %v285 = vadd.f32 0.0, %v284
    %v286 = vpop.f32.mrb[0].mxu0
    %v287 = vpop.f32.mrb[0].mxu0
    %v288 = vpop.f32.mrb[0].mxu0
    %289 = vdwg.mxu0
    %v290 = vpack.c.bf16 %v285, %v285
    %v292 = vsel %vm61, %v290, 0
    %294 = vmatprep.subr.bf16.mxu0 0
    %295 = vmatpush1.bf16.msra.mxu0 %v110
    %296 = vmatprep.subr.bf16.mxu0 0
    %297 = vmatpush1.bf16.msra.mxu0 0
    %298 = vmatprep.subr.bf16.mxu0 0
    %299 = vmatpush1.bf16.msra.mxu0 0
    %300 = vmatprep.subr.bf16.mxu0 0
    %301 = vmatpush1.bf16.msra.mxu0 0
    %302 = vmatprep.subr.bf16.mxu0 0
    %303 = vmatpush1.bf16.msra.mxu0 0
    %304 = vmatprep.subr.bf16.mxu0 0
    %305 = vmatpush1.bf16.msra.mxu0 0
    %306 = vmatprep.subr.bf16.mxu0 0
    %307 = vmatpush1.bf16.msra.mxu0 0
    %308 = vmatprep.subr.bf16.mxu0 0
    %309 = vmatpush1.bf16.msra.mxu0 0
    %310 = vmatprep.subr.bf16.mxu0 0
    %311 = vmatpush1.bf16.msra.mxu0 0
    %312 = vmatprep.subr.bf16.mxu0 0
    %313 = vmatpush1.bf16.msra.mxu0 0
    %314 = vmatprep.subr.bf16.mxu0 0
    %315 = vmatpush1.bf16.msra.mxu0 0
    %316 = vmatprep.subr.bf16.mxu0 0
    %317 = vmatpush1.bf16.msra.mxu0 0
    %318 = vmatprep.subr.bf16.mxu0 0
    %319 = vmatpush1.bf16.msra.mxu0 0
    %320 = vmatprep.subr.bf16.mxu0 0
    %321 = vmatpush1.bf16.msra.mxu0 0
    %322 = vmatprep.subr.bf16.mxu0 0
    %323 = vmatpush1.bf16.msra.mxu0 0
    %324 = vmatprep.subr.bf16.mxu0 0
    %325 = vmatpush1.bf16.msra.mxu0 0
    %326 = vmatprep.mubr.bf16.mxu0 0
    %327 = vmatmul.mubr.bf16.gmra.mrb[0].mxu0 %v292
    %v328 = vpop.f32.mrb[0].mxu0
    %v329 = vadd.f32 0.0, %v328
    %v330 = vpop.f32.mrb[0].mxu0
    %v331 = vpop.f32.mrb[0].mxu0
    %v332 = vpop.f32.mrb[0].mxu0
    %333 = vdwg.mxu0
    %s334 = scalar_lea.vmem [#allocation8], 16
    %335 = vst [vmem:[%s334] sm:$0xff] %v329
    %s336 = scalar_lea.vmem [#allocation2], 48
    %v337 = vld [vmem:[%s336] sm:$0xff]
    %v338 = vld [vmem:[%s336 + $0x8] sm:$0xff]
    %v339 = vpack.c.bf16 %v338, %v337
    %340 = vmatprep.subr.bf16.mxu0 0
    %341 = vmatpush1.bf16.msra.mxu0 %v339
    %342 = vmatprep.subr.bf16.mxu0 0
    %343 = vmatpush1.bf16.msra.mxu0 0
    %344 = vmatprep.subr.bf16.mxu0 0
    %345 = vmatpush1.bf16.msra.mxu0 0
    %346 = vmatprep.subr.bf16.mxu0 0
    %347 = vmatpush1.bf16.msra.mxu0 0
    %348 = vmatprep.subr.bf16.mxu0 0
    %349 = vmatpush1.bf16.msra.mxu0 0
    %350 = vmatprep.subr.bf16.mxu0 0
    %351 = vmatpush1.bf16.msra.mxu0 0
    %352 = vmatprep.subr.bf16.mxu0 0
    %353 = vmatpush1.bf16.msra.mxu0 0
    %354 = vmatprep.subr.bf16.mxu0 0
    %355 = vmatpush1.bf16.msra.mxu0 0
    %356 = vmatprep.subr.bf16.mxu0 0
    %357 = vmatpush1.bf16.msra.mxu0 0
    %358 = vmatprep.subr.bf16.mxu0 0
    %359 = vmatpush1.bf16.msra.mxu0 0
    %360 = vmatprep.subr.bf16.mxu0 0
    %361 = vmatpush1.bf16.msra.mxu0 0
    %362 = vmatprep.subr.bf16.mxu0 0
    %363 = vmatpush1.bf16.msra.mxu0 0
    %364 = vmatprep.subr.bf16.mxu0 0
    %365 = vmatpush1.bf16.msra.mxu0 0
    %366 = vmatprep.subr.bf16.mxu0 0
    %367 = vmatpush1.bf16.msra.mxu0 0
    %368 = vmatprep.subr.bf16.mxu0 0
    %369 = vmatpush1.bf16.msra.mxu0 0
    %370 = vmatprep.subr.bf16.mxu0 0
    %371 = vmatpush1.bf16.msra.mxu0 0
    %372 = vmatprep.mubr.bf16.mxu0 0
    %373 = vmatmul.mubr.bf16.gmra.mrb[0].mxu0 %v63
    %v374 = vpop.f32.mrb[0].mxu0
    %v375 = vadd.f32 0.0, %v374
    %v376 = vpop.f32.mrb[0].mxu0
    %v377 = vpop.f32.mrb[0].mxu0
    %v378 = vpop.f32.mrb[0].mxu0
    %379 = vdwg.mxu0
    %v380 = vpack.c.bf16 %v375, %v375
    %v382 = vsel %vm61, %v380, 0
    %384 = vmatprep.subr.bf16.mxu0 0
    %385 = vmatpush1.bf16.msra.mxu0 %v110
    %386 = vmatprep.subr.bf16.mxu0 0
    %387 = vmatpush1.bf16.msra.mxu0 0
    %388 = vmatprep.subr.bf16.mxu0 0
    %389 = vmatpush1.bf16.msra.mxu0 0
    %390 = vmatprep.subr.bf16.mxu0 0
    %391 = vmatpush1.bf16.msra.mxu0 0
    %392 = vmatprep.subr.bf16.mxu0 0
    %393 = vmatpush1.bf16.msra.mxu0 0
    %394 = vmatprep.subr.bf16.mxu0 0
    %395 = vmatpush1.bf16.msra.mxu0 0
    %396 = vmatprep.subr.bf16.mxu0 0
    %397 = vmatpush1.bf16.msra.mxu0 0
    %398 = vmatprep.subr.bf16.mxu0 0
    %399 = vmatpush1.bf16.msra.mxu0 0
    %400 = vmatprep.subr.bf16.mxu0 0
    %401 = vmatpush1.bf16.msra.mxu0 0
    %402 = vmatprep.subr.bf16.mxu0 0
    %403 = vmatpush1.bf16.msra.mxu0 0
    %404 = vmatprep.subr.bf16.mxu0 0
    %405 = vmatpush1.bf16.msra.mxu0 0
    %406 = vmatprep.subr.bf16.mxu0 0
    %407 = vmatpush1.bf16.msra.mxu0 0
    %408 = vmatprep.subr.bf16.mxu0 0
    %409 = vmatpush1.bf16.msra.mxu0 0
    %410 = vmatprep.subr.bf16.mxu0 0
    %411 = vmatpush1.bf16.msra.mxu0 0
    %412 = vmatprep.subr.bf16.mxu0 0
    %413 = vmatpush1.bf16.msra.mxu0 0
    %414 = vmatprep.subr.bf16.mxu0 0
    %415 = vmatpush1.bf16.msra.mxu0 0
    %416 = vmatprep.mubr.bf16.mxu0 0
    %417 = vmatmul.mubr.bf16.gmra.mrb[0].mxu0 %v382
    %v418 = vpop.f32.mrb[0].mxu0
    %v419 = vadd.f32 0.0, %v418
    %v420 = vpop.f32.mrb[0].mxu0
    %v421 = vpop.f32.mrb[0].mxu0
    %v422 = vpop.f32.mrb[0].mxu0
    %423 = vdwg.mxu0
    %s424 = scalar_lea.vmem [#allocation8], 24
    %425 = vst [vmem:[%s424] sm:$0xff] %v419
    %s426 = scalar_lea.vmem [#allocation2], 64
    %v427 = vld [vmem:[%s426] sm:$0xff]
    %v428 = vld [vmem:[%s426 + $0x8] sm:$0xff]
    %v429 = vpack.c.bf16 %v428, %v427
    %430 = vmatprep.subr.bf16.mxu0 0
    %431 = vmatpush1.bf16.msra.mxu0 %v429
    %432 = vmatprep.subr.bf16.mxu0 0
    %433 = vmatpush1.bf16.msra.mxu0 0
    %434 = vmatprep.subr.bf16.mxu0 0
    %435 = vmatpush1.bf16.msra.mxu0 0
    %436 = vmatprep.subr.bf16.mxu0 0
    %437 = vmatpush1.bf16.msra.mxu0 0
    %438 = vmatprep.subr.bf16.mxu0 0
    %439 = vmatpush1.bf16.msra.mxu0 0
    %440 = vmatprep.subr.bf16.mxu0 0
    %441 = vmatpush1.bf16.msra.mxu0 0
    %442 = vmatprep.subr.bf16.mxu0 0
    %443 = vmatpush1.bf16.msra.mxu0 0
    %444 = vmatprep.subr.bf16.mxu0 0
    %445 = vmatpush1.bf16.msra.mxu0 0
    %446 = vmatprep.subr.bf16.mxu0 0
    %447 = vmatpush1.bf16.msra.mxu0 0
    %448 = vmatprep.subr.bf16.mxu0 0
    %449 = vmatpush1.bf16.msra.mxu0 0
    %450 = vmatprep.subr.bf16.mxu0 0
    %451 = vmatpush1.bf16.msra.mxu0 0
    %452 = vmatprep.subr.bf16.mxu0 0
    %453 = vmatpush1.bf16.msra.mxu0 0
    %454 = vmatprep.subr.bf16.mxu0 0
    %455 = vmatpush1.bf16.msra.mxu0 0
    %456 = vmatprep.subr.bf16.mxu0 0
    %457 = vmatpush1.bf16.msra.mxu0 0
    %458 = vmatprep.subr.bf16.mxu0 0
    %459 = vmatpush1.bf16.msra.mxu0 0
    %460 = vmatprep.subr.bf16.mxu0 0
    %461 = vmatpush1.bf16.msra.mxu0 0
    %462 = vmatprep.mubr.bf16.mxu0 0
    %463 = vmatmul.mubr.bf16.gmra.mrb[0].mxu0 %v63
    %v464 = vpop.f32.mrb[0].mxu0
    %v465 = vadd.f32 0.0, %v464
    %v466 = vpop.f32.mrb[0].mxu0
    %v467 = vpop.f32.mrb[0].mxu0
    %v468 = vpop.f32.mrb[0].mxu0
    %469 = vdwg.mxu0
    %v470 = vpack.c.bf16 %v465, %v465
    %v472 = vsel %vm61, %v470, 0
    %474 = vmatprep.subr.bf16.mxu0 0
    %475 = vmatpush1.bf16.msra.mxu0 %v110
    %476 = vmatprep.subr.bf16.mxu0 0
    %477 = vmatpush1.bf16.msra.mxu0 0
    %478 = vmatprep.subr.bf16.mxu0 0
    %479 = vmatpush1.bf16.msra.mxu0 0
    %480 = vmatprep.subr.bf16.mxu0 0
    %481 = vmatpush1.bf16.msra.mxu0 0
    %482 = vmatprep.subr.bf16.mxu0 0
    %483 = vmatpush1.bf16.msra.mxu0 0
    %484 = vmatprep.subr.bf16.mxu0 0
    %485 = vmatpush1.bf16.msra.mxu0 0
    %486 = vmatprep.subr.bf16.mxu0 0
    %487 = vmatpush1.bf16.msra.mxu0 0
    %488 = vmatprep.subr.bf16.mxu0 0
    %489 = vmatpush1.bf16.msra.mxu0 0
    %490 = vmatprep.subr.bf16.mxu0 0
    %491 = vmatpush1.bf16.msra.mxu0 0
    %492 = vmatprep.subr.bf16.mxu0 0
    %493 = vmatpush1.bf16.msra.mxu0 0
    %494 = vmatprep.subr.bf16.mxu0 0
    %495 = vmatpush1.bf16.msra.mxu0 0
    %496 = vmatprep.subr.bf16.mxu0 0
    %497 = vmatpush1.bf16.msra.mxu0 0
    %498 = vmatprep.subr.bf16.mxu0 0
    %499 = vmatpush1.bf16.msra.mxu0 0
    %500 = vmatprep.subr.bf16.mxu0 0
    %501 = vmatpush1.bf16.msra.mxu0 0
    %502 = vmatprep.subr.bf16.mxu0 0
    %503 = vmatpush1.bf16.msra.mxu0 0
    %504 = vmatprep.subr.bf16.mxu0 0
    %505 = vmatpush1.bf16.msra.mxu0 0
    %506 = vmatprep.mubr.bf16.mxu0 0
    %507 = vmatmul.mubr.bf16.gmra.mrb[0].mxu0 %v472
    %v508 = vpop.f32.mrb[0].mxu0
    %v509 = vadd.f32 0.0, %v508
    %v510 = vpop.f32.mrb[0].mxu0
    %v511 = vpop.f32.mrb[0].mxu0
    %v512 = vpop.f32.mrb[0].mxu0
    %513 = vdwg.mxu0
    %s514 = scalar_lea.vmem [#allocation8], 32
    %515 = vst [vmem:[%s514] sm:$0xff] %v509
    %s516 = scalar_lea.vmem [#allocation2], 80
    %v517 = vld [vmem:[%s516] sm:$0xff]
    %v518 = vld [vmem:[%s516 + $0x8] sm:$0xff]
    %v519 = vpack.c.bf16 %v518, %v517
    %520 = vmatprep.subr.bf16.mxu0 0
    %521 = vmatpush1.bf16.msra.mxu0 %v519
    %522 = vmatprep.subr.bf16.mxu0 0
    %523 = vmatpush1.bf16.msra.mxu0 0
    %524 = vmatprep.subr.bf16.mxu0 0
    %525 = vmatpush1.bf16.msra.mxu0 0
    %526 = vmatprep.subr.bf16.mxu0 0
    %527 = vmatpush1.bf16.msra.mxu0 0
    %528 = vmatprep.subr.bf16.mxu0 0
    %529 = vmatpush1.bf16.msra.mxu0 0
    %530 = vmatprep.subr.bf16.mxu0 0
    %531 = vmatpush1.bf16.msra.mxu0 0
    %532 = vmatprep.subr.bf16.mxu0 0
    %533 = vmatpush1.bf16.msra.mxu0 0
    %534 = vmatprep.subr.bf16.mxu0 0
    %535 = vmatpush1.bf16.msra.mxu0 0
    %536 = vmatprep.subr.bf16.mxu0 0
    %537 = vmatpush1.bf16.msra.mxu0 0
    %538 = vmatprep.subr.bf16.mxu0 0
    %539 = vmatpush1.bf16.msra.mxu0 0
    %540 = vmatprep.subr.bf16.mxu0 0
    %541 = vmatpush1.bf16.msra.mxu0 0
    %542 = vmatprep.subr.bf16.mxu0 0
    %543 = vmatpush1.bf16.msra.mxu0 0
    %544 = vmatprep.subr.bf16.mxu0 0
    %545 = vmatpush1.bf16.msra.mxu0 0
    %546 = vmatprep.subr.bf16.mxu0 0
    %547 = vmatpush1.bf16.msra.mxu0 0
    %548 = vmatprep.subr.bf16.mxu0 0
    %549 = vmatpush1.bf16.msra.mxu0 0
    %550 = vmatprep.subr.bf16.mxu0 0
    %551 = vmatpush1.bf16.msra.mxu0 0
    %552 = vmatprep.mubr.bf16.mxu0 0
    %553 = vmatmul.mubr.bf16.gmra.mrb[0].mxu0 %v63
    %v554 = vpop.f32.mrb[0].mxu0
    %v555 = vadd.f32 0.0, %v554
    %v556 = vpop.f32.mrb[0].mxu0
    %v557 = vpop.f32.mrb[0].mxu0
    %v558 = vpop.f32.mrb[0].mxu0
    %559 = vdwg.mxu0
    %v560 = vpack.c.bf16 %v555, %v555
    %v562 = vsel %vm61, %v560, 0
    %564 = vmatprep.subr.bf16.mxu0 0
    %565 = vmatpush1.bf16.msra.mxu0 %v110
    %566 = vmatprep.subr.bf16.mxu0 0
    %567 = vmatpush1.bf16.msra.mxu0 0
    %568 = vmatprep.subr.bf16.mxu0 0
    %569 = vmatpush1.bf16.msra.mxu0 0
    %570 = vmatprep.subr.bf16.mxu0 0
    %571 = vmatpush1.bf16.msra.mxu0 0
    %572 = vmatprep.subr.bf16.mxu0 0
    %573 = vmatpush1.bf16.msra.mxu0 0
    %574 = vmatprep.subr.bf16.mxu0 0
    %575 = vmatpush1.bf16.msra.mxu0 0
    %576 = vmatprep.subr.bf16.mxu0 0
    %577 = vmatpush1.bf16.msra.mxu0 0
    %578 = vmatprep.subr.bf16.mxu0 0
    %579 = vmatpush1.bf16.msra.mxu0 0
    %580 = vmatprep.subr.bf16.mxu0 0
    %581 = vmatpush1.bf16.msra.mxu0 0
    %582 = vmatprep.subr.bf16.mxu0 0
    %583 = vmatpush1.bf16.msra.mxu0 0
    %584 = vmatprep.subr.bf16.mxu0 0
    %585 = vmatpush1.bf16.msra.mxu0 0
    %586 = vmatprep.subr.bf16.mxu0 0
    %587 = vmatpush1.bf16.msra.mxu0 0
    %588 = vmatprep.subr.bf16.mxu0 0
    %589 = vmatpush1.bf16.msra.mxu0 0
    %590 = vmatprep.subr.bf16.mxu0 0
    %591 = vmatpush1.bf16.msra.mxu0 0
    %592 = vmatprep.subr.bf16.mxu0 0
    %593 = vmatpush1.bf16.msra.mxu0 0
    %594 = vmatprep.subr.bf16.mxu0 0
    %595 = vmatpush1.bf16.msra.mxu0 0
    %596 = vmatprep.mubr.bf16.mxu0 0
    %597 = vmatmul.mubr.bf16.gmra.mrb[0].mxu0 %v562
    %v598 = vpop.f32.mrb[0].mxu0
    %v599 = vadd.f32 0.0, %v598
    %v600 = vpop.f32.mrb[0].mxu0
    %v601 = vpop.f32.mrb[0].mxu0
    %v602 = vpop.f32.mrb[0].mxu0
    %603 = vdwg.mxu0
    %s604 = scalar_lea.vmem [#allocation8], 40
    %605 = vst [vmem:[%s604] sm:$0xff] %v599
    // Predicated region
    $region26: #{tpu_custom_call.1} parent=1 // pred_check
      _
    $region27: #{tpu_custom_call.1} parent=1 // pred_check_branch
      %607 = sbr.rel (0) target = $region29
    $region28: #{tpu_custom_call.1} parent=1 // pred_region
      %s609 = ssub.s32 768, 768
      %610 = vsyncadd [#allocation4], %s609
      %s611 = sshll.u32 [#allocation8], 4
      %s612 = int_to_ptr.vmem [resolvable:$true] %s611
      %617 = dma.vmem_to_hbm [thread:$0]  %s612, 768, %s3, [#allocation4], 128, 128, 8
    $region29: #{tpu_custom_call.1} parent=1 // pred_fallthru
      _
    // Predicated region
    $region30: #{tpu_custom_call.1} parent=1 // pred_check
      _
    $region31: #{tpu_custom_call.1} parent=1 // pred_check_branch
      %619 = sbr.rel (0) target = $region33
    $region32: #{tpu_custom_call.1} parent=1 // pred_region
      %620 = dma.done [#allocation4], 768
    $region33: #{tpu_custom_call.1} parent=1 // pred_fallthru
      _
    %621 = vsyncpa [#allocation3], 1
    %622 = vsyncpa [#allocation6], 1
    %623 = vsyncpa [#allocation4], 1

// kernel: tpu_custom_call.1
$region0: #{tpu_custom_call.1}
  #allocation0 [shape = 'u32[]', space=smem, size = 0x4, offset = 0x4, fixed_abs, tag = 'smem constant byte address 0x4 - core index']
  #allocation1 [shape = 'u32[144,128]{1,0:T(1,128)}', space=vmem, size = 0x12000, scoped, tag = 'internal scratch']
  %s0 = inlined_call_operand.hbm [shape: f32[6,16,16], index: 0, kind: input, shape index: {}]
  %s1 = inlined_call_operand.hbm [shape: bf16[8,16], index: 1, kind: input, shape index: {}]
  %s2 = inlined_call_operand.hbm [shape: bf16[16,128], index: 2, kind: input, shape index: {}]
  %s3 = inlined_call_operand.hbm [shape: f32[6,8,128], index: 3, kind: output, shape index: {}]
  %s4 = sld [smem:[#allocation0]]
  $region34: #{tpu_custom_call.1} parent=0
    _
  %s6 = ssub.s32 1, %s4
  %s7 = scalar_select 0, %s6, %s4
  $region1: #{tpu_custom_call.1} parent=0
    #allocation2 [shape = 'u8[49152]{0}', space=vmem, size = 0xc000, scoped, tag = 'input window, operand 0, single buffered']
    #allocation3 [shape = 's32[1]{0}', space=sflag, size = 0x4, scoped, tag = 'scoped memory for tpu_custom_call.1']
    #allocation4 [shape = 's32[1]{0}', space=sflag, size = 0x4, scoped, tag = 'scoped memory for tpu_custom_call.1']
    #allocation5 [shape = 'u8[2048]{0}', space=vmem, size = 0x800, scoped, tag = 'input window, operand 1, single buffered']
    #allocation6 [shape = 's32[1]{0}', space=sflag, size = 0x4, scoped, tag = 'scoped memory for tpu_custom_call.1']
    #allocation7 [shape = 'u8[4096]{0}', space=vmem, size = 0x1000, scoped, tag = 'input window, operand 2, single buffered']
    #allocation8 [shape = 'u8[24576]{0}', space=vmem, size = 0x6000, scoped, tag = 'output window, operand 0, single buffered']
    %8 = vsyncpa [#allocation3], 0
    %9 = vsyncpa [#allocation6], 0
    %10 = vsyncpa [#allocation4], 0
    // Predicated region
    $region2: #{tpu_custom_call.1} parent=1 // pred_check
      _
    $region3: #{tpu_custom_call.1} parent=1 // pred_check_branch
      %12 = sbr.rel (0) target = $region5
    $region4: #{tpu_custom_call.1} parent=1 // pred_region
      %s14 = ssub.s32 1536, 1536
      %15 = vsyncadd [#allocation3], %s14
      %s16 = sshll.u32 [#allocation2], 4
      %s17 = int_to_ptr.vmem [resolvable:$true] %s16
      %22 = dma.hbm_to_vmem [thread:$0]  %s0, 1536, %s17, [#allocation3], 128, 128, 8
    $region5: #{tpu_custom_call.1} parent=1 // pred_fallthru
      _
    // Predicated region
    $region6: #{tpu_custom_call.1} parent=1 // pred_check
      _
    $region7: #{tpu_custom_call.1} parent=1 // pred_check_branch
      %24 = sbr.rel (0) target = $region9
    $region8: #{tpu_custom_call.1} parent=1 // pred_region
      %s26 = ssub.s32 64, 64
      %27 = vsyncadd [#allocation6], %s26
      %s29 = sshll.u32 [#allocation5], 4
      %s30 = int_to_ptr.vmem [resolvable:$true] %s29
      %32 = dma.hbm_to_vmem [thread:$0]  %s1, 64, %s30, [#allocation6]
    $region9: #{tpu_custom_call.1} parent=1 // pred_fallthru
      _
    // Predicated region
    $region10: #{tpu_custom_call.1} parent=1 // pred_check
      _
    $region11: #{tpu_custom_call.1} parent=1 // pred_check_branch
      %34 = sbr.rel (0) target = $region13
    $region12: #{tpu_custom_call.1} parent=1 // pred_region
      %s36 = ssub.s32 128, 128
      %37 = vsyncadd [#allocation6], %s36
      %s38 = sshll.u32 [#allocation7], 4
      %s39 = int_to_ptr.vmem [resolvable:$true] %s38
      %44 = dma.hbm_to_vmem [thread:$0]  %s2, 128, %s39, [#allocation6], 64, 64, 4
    $region13: #{tpu_custom_call.1} parent=1 // pred_fallthru
      _
    // Predicated region
    $region14: #{tpu_custom_call.1} parent=1 // pred_check
      _
    $region15: #{tpu_custom_call.1} parent=1 // pred_check_branch
      %46 = sbr.rel (0) target = $region17
    $region16: #{tpu_custom_call.1} parent=1 // pred_region
      %47 = dma.done [#allocation3], 1536
    $region17: #{tpu_custom_call.1} parent=1 // pred_fallthru
      _
    // Predicated region
    $region18: #{tpu_custom_call.1} parent=1 // pred_check
      _
    $region19: #{tpu_custom_call.1} parent=1 // pred_check_branch
      %49 = sbr.rel (0) target = $region21
    $region20: #{tpu_custom_call.1} parent=1 // pred_region
      %50 = dma.done [#allocation6], 64
    $region21: #{tpu_custom_call.1} parent=1 // pred_fallthru
      _
    // Predicated region
    $region22: #{tpu_custom_call.1} parent=1 // pred_check
      _
    $region23: #{tpu_custom_call.1} parent=1 // pred_check_branch
      %52 = sbr.rel (0) target = $region25
    $region24: #{tpu_custom_call.1} parent=1 // pred_region
      %53 = dma.done [#allocation6], 128
    $region25: #{tpu_custom_call.1} parent=1 // pred_fallthru
      _
    %v55 = vld [vmem:[#allocation5] sm:$0xf]
    %v56 = vld [vmem:[#allocation7] sm:$0xf]
    %v57 = vld [vmem:[#allocation7 + $0x4] sm:$0xf]
    %v58 = vld [vmem:[#allocation2] sm:$0xff]
    %v59 = vld [vmem:[#allocation2 + $0x8] sm:$0xff]
    %v60 = vpack.c.bf16 %v59, %v58
    %vm61 = vcmask 130048
    %v63 = vsel %vm61, %v55, 0
    %65 = vmatprep.subr.bf16.mxu0 0
    %66 = vmatpush1.bf16.msra.mxu0 %v60
    %67 = vmatprep.subr.bf16.mxu0 0
    %68 = vmatpush1.bf16.msra.mxu0 0
    %69 = vmatprep.subr.bf16.mxu0 0
    %70 = vmatpush1.bf16.msra.mxu0 0
    %71 = vmatprep.subr.bf16.mxu0 0
    %72 = vmatpush1.bf16.msra.mxu0 0
    %73 = vmatprep.subr.bf16.mxu0 0
    %74 = vmatpush1.bf16.msra.mxu0 0
    %75 = vmatprep.subr.bf16.mxu0 0
    %76 = vmatpush1.bf16.msra.mxu0 0
    %77 = vmatprep.subr.bf16.mxu0 0
    %78 = vmatpush1.bf16.msra.mxu0 0
    %79 = vmatprep.subr.bf16.mxu0 0
    %80 = vmatpush1.bf16.msra.mxu0 0
    %81 = vmatprep.subr.bf16.mxu0 0
    %82 = vmatpush1.bf16.msra.mxu0 0
    %83 = vmatprep.subr.bf16.mxu0 0
    %84 = vmatpush1.bf16.msra.mxu0 0
    %85 = vmatprep.subr.bf16.mxu0 0
    %86 = vmatpush1.bf16.msra.mxu0 0
    %87 = vmatprep.subr.bf16.mxu0 0
    %88 = vmatpush1.bf16.msra.mxu0 0
    %89 = vmatprep.subr.bf16.mxu0 0
    %90 = vmatpush1.bf16.msra.mxu0 0
    %91 = vmatprep.subr.bf16.mxu0 0
    %92 = vmatpush1.bf16.msra.mxu0 0
    %93 = vmatprep.subr.bf16.mxu0 0
    %94 = vmatpush1.bf16.msra.mxu0 0
    %95 = vmatprep.subr.bf16.mxu0 0
    %96 = vmatpush1.bf16.msra.mxu0 0
    %97 = vmatprep.mubr.bf16.mxu0 0
    %98 = vmatmul.mubr.bf16.gmra.mrb[0].mxu0 %v63
    %v99 = vpop.f32.mrb[0].mxu0
    %v100 = vadd.f32 0.0, %v99
    %v101 = vpop.f32.mrb[0].mxu0
    %v102 = vpop.f32.mrb[0].mxu0
    %v103 = vpop.f32.mrb[0].mxu0
    %104 = vdwg.mxu0
    %v105 = vpack.c.bf16 %v100, %v100
    %v108 = vunpack.c.l.b16 %v56
    %v109 = vunpack.c.l.b16 %v57
    %v110 = vpack.c.b16 %v109, %v108
    %v113 = vsel %vm61, %v105, 0
    %115 = vmatprep.subr.bf16.mxu0 0
    %116 = vmatpush1.bf16.msra.mxu0 %v110
    %117 = vmatprep.subr.bf16.mxu0 0
    %118 = vmatpush1.bf16.msra.mxu0 0
    %119 = vmatprep.subr.bf16.mxu0 0
    %120 = vmatpush1.bf16.msra.mxu0 0
    %121 = vmatprep.subr.bf16.mxu0 0
    %122 = vmatpush1.bf16.msra.mxu0 0
    %123 = vmatprep.subr.bf16.mxu0 0
    %124 = vmatpush1.bf16.msra.mxu0 0
    %125 = vmatprep.subr.bf16.mxu0 0
    %126 = vmatpush1.bf16.msra.mxu0 0
    %127 = vmatprep.subr.bf16.mxu0 0
    %128 = vmatpush1.bf16.msra.mxu0 0
    %129 = vmatprep.subr.bf16.mxu0 0
    %130 = vmatpush1.bf16.msra.mxu0 0
    %131 = vmatprep.subr.bf16.mxu0 0
    %132 = vmatpush1.bf16.msra.mxu0 0
    %133 = vmatprep.subr.bf16.mxu0 0
    %134 = vmatpush1.bf16.msra.mxu0 0
    %135 = vmatprep.subr.bf16.mxu0 0
    %136 = vmatpush1.bf16.msra.mxu0 0
    %137 = vmatprep.subr.bf16.mxu0 0
    %138 = vmatpush1.bf16.msra.mxu0 0
    %139 = vmatprep.subr.bf16.mxu0 0
    %140 = vmatpush1.bf16.msra.mxu0 0
    %141 = vmatprep.subr.bf16.mxu0 0
    %142 = vmatpush1.bf16.msra.mxu0 0
    %143 = vmatprep.subr.bf16.mxu0 0
    %144 = vmatpush1.bf16.msra.mxu0 0
    %145 = vmatprep.subr.bf16.mxu0 0
    %146 = vmatpush1.bf16.msra.mxu0 0
    %147 = vmatprep.mubr.bf16.mxu0 0
    %148 = vmatmul.mubr.bf16.gmra.mrb[0].mxu0 %v113
    %v149 = vpop.f32.mrb[0].mxu0
    %v150 = vadd.f32 0.0, %v149
    %v151 = vpop.f32.mrb[0].mxu0
    %v152 = vpop.f32.mrb[0].mxu0
    %v153 = vpop.f32.mrb[0].mxu0
    %154 = vdwg.mxu0
    %155 = vst [vmem:[#allocation8] sm:$0xff] %v150
    %s156 = scalar_lea.vmem [#allocation2], 16
    %v157 = vld [vmem:[%s156] sm:$0xff]
    %v158 = vld [vmem:[%s156 + $0x8] sm:$0xff]
    %v159 = vpack.c.bf16 %v158, %v157
    %160 = vmatprep.subr.bf16.mxu0 0
    %161 = vmatpush1.bf16.msra.mxu0 %v159
    %162 = vmatprep.subr.bf16.mxu0 0
    %163 = vmatpush1.bf16.msra.mxu0 0
    %164 = vmatprep.subr.bf16.mxu0 0
    %165 = vmatpush1.bf16.msra.mxu0 0
    %166 = vmatprep.subr.bf16.mxu0 0
    %167 = vmatpush1.bf16.msra.mxu0 0
    %168 = vmatprep.subr.bf16.mxu0 0
    %169 = vmatpush1.bf16.msra.mxu0 0
    %170 = vmatprep.subr.bf16.mxu0 0
    %171 = vmatpush1.bf16.msra.mxu0 0
    %172 = vmatprep.subr.bf16.mxu0 0
    %173 = vmatpush1.bf16.msra.mxu0 0
    %174 = vmatprep.subr.bf16.mxu0 0
    %175 = vmatpush1.bf16.msra.mxu0 0
    %176 = vmatprep.subr.bf16.mxu0 0
    %177 = vmatpush1.bf16.msra.mxu0 0
    %178 = vmatprep.subr.bf16.mxu0 0
    %179 = vmatpush1.bf16.msra.mxu0 0
    %180 = vmatprep.subr.bf16.mxu0 0
    %181 = vmatpush1.bf16.msra.mxu0 0
    %182 = vmatprep.subr.bf16.mxu0 0
    %183 = vmatpush1.bf16.msra.mxu0 0
    %184 = vmatprep.subr.bf16.mxu0 0
    %185 = vmatpush1.bf16.msra.mxu0 0
    %186 = vmatprep.subr.bf16.mxu0 0
    %187 = vmatpush1.bf16.msra.mxu0 0
    %188 = vmatprep.subr.bf16.mxu0 0
    %189 = vmatpush1.bf16.msra.mxu0 0
    %190 = vmatprep.subr.bf16.mxu0 0
    %191 = vmatpush1.bf16.msra.mxu0 0
    %192 = vmatprep.mubr.bf16.mxu0 0
    %193 = vmatmul.mubr.bf16.gmra.mrb[0].mxu0 %v63
    %v194 = vpop.f32.mrb[0].mxu0
    %v195 = vadd.f32 0.0, %v194
    %v196 = vpop.f32.mrb[0].mxu0
    %v197 = vpop.f32.mrb[0].mxu0
    %v198 = vpop.f32.mrb[0].mxu0
    %199 = vdwg.mxu0
    %v200 = vpack.c.bf16 %v195, %v195
    %v202 = vsel %vm61, %v200, 0
    %204 = vmatprep.subr.bf16.mxu0 0
    %205 = vmatpush1.bf16.msra.mxu0 %v110
    %206 = vmatprep.subr.bf16.mxu0 0
    %207 = vmatpush1.bf16.msra.mxu0 0
    %208 = vmatprep.subr.bf16.mxu0 0
    %209 = vmatpush1.bf16.msra.mxu0 0
    %210 = vmatprep.subr.bf16.mxu0 0
    %211 = vmatpush1.bf16.msra.mxu0 0
    %212 = vmatprep.subr.bf16.mxu0 0
    %213 = vmatpush1.bf16.msra.mxu0 0
    %214 = vmatprep.subr.bf16.mxu0 0
    %215 = vmatpush1.bf16.msra.mxu0 0
    %216 = vmatprep.subr.bf16.mxu0 0
    %217 = vmatpush1.bf16.msra.mxu0 0
    %218 = vmatprep.subr.bf16.mxu0 0
    %219 = vmatpush1.bf16.msra.mxu0 0
    %220 = vmatprep.subr.bf16.mxu0 0
    %221 = vmatpush1.bf16.msra.mxu0 0
    %222 = vmatprep.subr.bf16.mxu0 0
    %223 = vmatpush1.bf16.msra.mxu0 0
    %224 = vmatprep.subr.bf16.mxu0 0
    %225 = vmatpush1.bf16.msra.mxu0 0
    %226 = vmatprep.subr.bf16.mxu0 0
    %227 = vmatpush1.bf16.msra.mxu0 0
    %228 = vmatprep.subr.bf16.mxu0 0
    %229 = vmatpush1.bf16.msra.mxu0 0
    %230 = vmatprep.subr.bf16.mxu0 0
    %231 = vmatpush1.bf16.msra.mxu0 0
    %232 = vmatprep.subr.bf16.mxu0 0
    %233 = vmatpush1.bf16.msra.mxu0 0
    %234 = vmatprep.subr.bf16.mxu0 0
    %235 = vmatpush1.bf16.msra.mxu0 0
    %236 = vmatprep.mubr.bf16.mxu0 0
    %237 = vmatmul.mubr.bf16.gmra.mrb[0].mxu0 %v202
    %v238 = vpop.f32.mrb[0].mxu0
    %v239 = vadd.f32 0.0, %v238
    %v240 = vpop.f32.mrb[0].mxu0
    %v241 = vpop.f32.mrb[0].mxu0
    %v242 = vpop.f32.mrb[0].mxu0
    %243 = vdwg.mxu0
    %s244 = scalar_lea.vmem [#allocation8], 8
    %245 = vst [vmem:[%s244] sm:$0xff] %v239
    %s246 = scalar_lea.vmem [#allocation2], 32
    %v247 = vld [vmem:[%s246] sm:$0xff]
    %v248 = vld [vmem:[%s246 + $0x8] sm:$0xff]
    %v249 = vpack.c.bf16 %v248, %v247
    %250 = vmatprep.subr.bf16.mxu0 0
    %251 = vmatpush1.bf16.msra.mxu0 %v249
    %252 = vmatprep.subr.bf16.mxu0 0
    %253 = vmatpush1.bf16.msra.mxu0 0
    %254 = vmatprep.subr.bf16.mxu0 0
    %255 = vmatpush1.bf16.msra.mxu0 0
    %256 = vmatprep.subr.bf16.mxu0 0
    %257 = vmatpush1.bf16.msra.mxu0 0
    %258 = vmatprep.subr.bf16.mxu0 0
    %259 = vmatpush1.bf16.msra.mxu0 0
    %260 = vmatprep.subr.bf16.mxu0 0
    %261 = vmatpush1.bf16.msra.mxu0 0
    %262 = vmatprep.subr.bf16.mxu0 0
    %263 = vmatpush1.bf16.msra.mxu0 0
    %264 = vmatprep.subr.bf16.mxu0 0
    %265 = vmatpush1.bf16.msra.mxu0 0
    %266 = vmatprep.subr.bf16.mxu0 0
    %267 = vmatpush1.bf16.msra.mxu0 0
    %268 = vmatprep.subr.bf16.mxu0 0
    %269 = vmatpush1.bf16.msra.mxu0 0
    %270 = vmatprep.subr.bf16.mxu0 0
    %271 = vmatpush1.bf16.msra.mxu0 0
    %272 = vmatprep.subr.bf16.mxu0 0
    %273 = vmatpush1.bf16.msra.mxu0 0
    %274 = vmatprep.subr.bf16.mxu0 0
    %275 = vmatpush1.bf16.msra.mxu0 0
    %276 = vmatprep.subr.bf16.mxu0 0
    %277 = vmatpush1.bf16.msra.mxu0 0
    %278 = vmatprep.subr.bf16.mxu0 0
    %279 = vmatpush1.bf16.msra.mxu0 0
    %280 = vmatprep.subr.bf16.mxu0 0
    %281 = vmatpush1.bf16.msra.mxu0 0
    %282 = vmatprep.mubr.bf16.mxu0 0
    %283 = vmatmul.mubr.bf16.gmra.mrb[0].mxu0 %v63
    %v284 = vpop.f32.mrb[0].mxu0
    %v285 = vadd.f32 0.0, %v284
    %v286 = vpop.f32.mrb[0].mxu0
    %v287 = vpop.f32.mrb[0].mxu0
    %v288 = vpop.f32.mrb[0].mxu0
    %289 = vdwg.mxu0
    %v290 = vpack.c.bf16 %v285, %v285
    %v292 = vsel %vm61, %v290, 0
    %294 = vmatprep.subr.bf16.mxu0 0
    %295 = vmatpush1.bf16.msra.mxu0 %v110
    %296 = vmatprep.subr.bf16.mxu0 0
    %297 = vmatpush1.bf16.msra.mxu0 0
    %298 = vmatprep.subr.bf16.mxu0 0
    %299 = vmatpush1.bf16.msra.mxu0 0
    %300 = vmatprep.subr.bf16.mxu0 0
    %301 = vmatpush1.bf16.msra.mxu0 0
    %302 = vmatprep.subr.bf16.mxu0 0
    %303 = vmatpush1.bf16.msra.mxu0 0
    %304 = vmatprep.subr.bf16.mxu0 0
    %305 = vmatpush1.bf16.msra.mxu0 0
    %306 = vmatprep.subr.bf16.mxu0 0
    %307 = vmatpush1.bf16.msra.mxu0 0
    %308 = vmatprep.subr.bf16.mxu0 0
    %309 = vmatpush1.bf16.msra.mxu0 0
    %310 = vmatprep.subr.bf16.mxu0 0
    %311 = vmatpush1.bf16.msra.mxu0 0
    %312 = vmatprep.subr.bf16.mxu0 0
    %313 = vmatpush1.bf16.msra.mxu0 0
    %314 = vmatprep.subr.bf16.mxu0 0
    %315 = vmatpush1.bf16.msra.mxu0 0
    %316 = vmatprep.subr.bf16.mxu0 0
    %317 = vmatpush1.bf16.msra.mxu0 0
    %318 = vmatprep.subr.bf16.mxu0 0
    %319 = vmatpush1.bf16.msra.mxu0 0
    %320 = vmatprep.subr.bf16.mxu0 0
    %321 = vmatpush1.bf16.msra.mxu0 0
    %322 = vmatprep.subr.bf16.mxu0 0
    %323 = vmatpush1.bf16.msra.mxu0 0
    %324 = vmatprep.subr.bf16.mxu0 0
    %325 = vmatpush1.bf16.msra.mxu0 0
    %326 = vmatprep.mubr.bf16.mxu0 0
    %327 = vmatmul.mubr.bf16.gmra.mrb[0].mxu0 %v292
    %v328 = vpop.f32.mrb[0].mxu0
    %v329 = vadd.f32 0.0, %v328
    %v330 = vpop.f32.mrb[0].mxu0
    %v331 = vpop.f32.mrb[0].mxu0
    %v332 = vpop.f32.mrb[0].mxu0
    %333 = vdwg.mxu0
    %s334 = scalar_lea.vmem [#allocation8], 16
    %335 = vst [vmem:[%s334] sm:$0xff] %v329
    %s336 = scalar_lea.vmem [#allocation2], 48
    %v337 = vld [vmem:[%s336] sm:$0xff]
    %v338 = vld [vmem:[%s336 + $0x8] sm:$0xff]
    %v339 = vpack.c.bf16 %v338, %v337
    %340 = vmatprep.subr.bf16.mxu0 0
    %341 = vmatpush1.bf16.msra.mxu0 %v339
    %342 = vmatprep.subr.bf16.mxu0 0
    %343 = vmatpush1.bf16.msra.mxu0 0
    %344 = vmatprep.subr.bf16.mxu0 0
    %345 = vmatpush1.bf16.msra.mxu0 0
    %346 = vmatprep.subr.bf16.mxu0 0
    %347 = vmatpush1.bf16.msra.mxu0 0
    %348 = vmatprep.subr.bf16.mxu0 0
    %349 = vmatpush1.bf16.msra.mxu0 0
    %350 = vmatprep.subr.bf16.mxu0 0
    %351 = vmatpush1.bf16.msra.mxu0 0
    %352 = vmatprep.subr.bf16.mxu0 0
    %353 = vmatpush1.bf16.msra.mxu0 0
    %354 = vmatprep.subr.bf16.mxu0 0
    %355 = vmatpush1.bf16.msra.mxu0 0
    %356 = vmatprep.subr.bf16.mxu0 0
    %357 = vmatpush1.bf16.msra.mxu0 0
    %358 = vmatprep.subr.bf16.mxu0 0
    %359 = vmatpush1.bf16.msra.mxu0 0
    %360 = vmatprep.subr.bf16.mxu0 0
    %361 = vmatpush1.bf16.msra.mxu0 0
    %362 = vmatprep.subr.bf16.mxu0 0
    %363 = vmatpush1.bf16.msra.mxu0 0
    %364 = vmatprep.subr.bf16.mxu0 0
    %365 = vmatpush1.bf16.msra.mxu0 0
    %366 = vmatprep.subr.bf16.mxu0 0
    %367 = vmatpush1.bf16.msra.mxu0 0
    %368 = vmatprep.subr.bf16.mxu0 0
    %369 = vmatpush1.bf16.msra.mxu0 0
    %370 = vmatprep.subr.bf16.mxu0 0
    %371 = vmatpush1.bf16.msra.mxu0 0
    %372 = vmatprep.mubr.bf16.mxu0 0
    %373 = vmatmul.mubr.bf16.gmra.mrb[0].mxu0 %v63
    %v374 = vpop.f32.mrb[0].mxu0
    %v375 = vadd.f32 0.0, %v374
    %v376 = vpop.f32.mrb[0].mxu0
    %v377 = vpop.f32.mrb[0].mxu0
    %v378 = vpop.f32.mrb[0].mxu0
    %379 = vdwg.mxu0
    %v380 = vpack.c.bf16 %v375, %v375
    %v382 = vsel %vm61, %v380, 0
    %384 = vmatprep.subr.bf16.mxu0 0
    %385 = vmatpush1.bf16.msra.mxu0 %v110
    %386 = vmatprep.subr.bf16.mxu0 0
    %387 = vmatpush1.bf16.msra.mxu0 0
    %388 = vmatprep.subr.bf16.mxu0 0
    %389 = vmatpush1.bf16.msra.mxu0 0
    %390 = vmatprep.subr.bf16.mxu0 0
    %391 = vmatpush1.bf16.msra.mxu0 0
    %392 = vmatprep.subr.bf16.mxu0 0
    %393 = vmatpush1.bf16.msra.mxu0 0
    %394 = vmatprep.subr.bf16.mxu0 0
    %395 = vmatpush1.bf16.msra.mxu0 0
    %396 = vmatprep.subr.bf16.mxu0 0
    %397 = vmatpush1.bf16.msra.mxu0 0
    %398 = vmatprep.subr.bf16.mxu0 0
    %399 = vmatpush1.bf16.msra.mxu0 0
    %400 = vmatprep.subr.bf16.mxu0 0
    %401 = vmatpush1.bf16.msra.mxu0 0
    %402 = vmatprep.subr.bf16.mxu0 0
    %403 = vmatpush1.bf16.msra.mxu0 0
    %404 = vmatprep.subr.bf16.mxu0 0
    %405 = vmatpush1.bf16.msra.mxu0 0
    %406 = vmatprep.subr.bf16.mxu0 0
    %407 = vmatpush1.bf16.msra.mxu0 0
    %408 = vmatprep.subr.bf16.mxu0 0
    %409 = vmatpush1.bf16.msra.mxu0 0
    %410 = vmatprep.subr.bf16.mxu0 0
    %411 = vmatpush1.bf16.msra.mxu0 0
    %412 = vmatprep.subr.bf16.mxu0 0
    %413 = vmatpush1.bf16.msra.mxu0 0
    %414 = vmatprep.subr.bf16.mxu0 0
    %415 = vmatpush1.bf16.msra.mxu0 0
    %416 = vmatprep.mubr.bf16.mxu0 0
    %417 = vmatmul.mubr.bf16.gmra.mrb[0].mxu0 %v382
    %v418 = vpop.f32.mrb[0].mxu0
    %v419 = vadd.f32 0.0, %v418
    %v420 = vpop.f32.mrb[0].mxu0
    %v421 = vpop.f32.mrb[0].mxu0
    %v422 = vpop.f32.mrb[0].mxu0
    %423 = vdwg.mxu0
    %s424 = scalar_lea.vmem [#allocation8], 24
    %425 = vst [vmem:[%s424] sm:$0xff] %v419
    %s426 = scalar_lea.vmem [#allocation2], 64
    %v427 = vld [vmem:[%s426] sm:$0xff]
    %v428 = vld [vmem:[%s426 + $0x8] sm:$0xff]
    %v429 = vpack.c.bf16 %v428, %v427
    %430 = vmatprep.subr.bf16.mxu0 0
    %431 = vmatpush1.bf16.msra.mxu0 %v429
    %432 = vmatprep.subr.bf16.mxu0 0
    %433 = vmatpush1.bf16.msra.mxu0 0
    %434 = vmatprep.subr.bf16.mxu0 0
    %435 = vmatpush1.bf16.msra.mxu0 0
    %436 = vmatprep.subr.bf16.mxu0 0
    %437 = vmatpush1.bf16.msra.mxu0 0
    %438 = vmatprep.subr.bf16.mxu0 0
    %439 = vmatpush1.bf16.msra.mxu0 0
    %440 = vmatprep.subr.bf16.mxu0 0
    %441 = vmatpush1.bf16.msra.mxu0 0
    %442 = vmatprep.subr.bf16.mxu0 0
    %443 = vmatpush1.bf16.msra.mxu0 0
    %444 = vmatprep.subr.bf16.mxu0 0
    %445 = vmatpush1.bf16.msra.mxu0 0
    %446 = vmatprep.subr.bf16.mxu0 0
    %447 = vmatpush1.bf16.msra.mxu0 0
    %448 = vmatprep.subr.bf16.mxu0 0
    %449 = vmatpush1.bf16.msra.mxu0 0
    %450 = vmatprep.subr.bf16.mxu0 0
    %451 = vmatpush1.bf16.msra.mxu0 0
    %452 = vmatprep.subr.bf16.mxu0 0
    %453 = vmatpush1.bf16.msra.mxu0 0
    %454 = vmatprep.subr.bf16.mxu0 0
    %455 = vmatpush1.bf16.msra.mxu0 0
    %456 = vmatprep.subr.bf16.mxu0 0
    %457 = vmatpush1.bf16.msra.mxu0 0
    %458 = vmatprep.subr.bf16.mxu0 0
    %459 = vmatpush1.bf16.msra.mxu0 0
    %460 = vmatprep.subr.bf16.mxu0 0
    %461 = vmatpush1.bf16.msra.mxu0 0
    %462 = vmatprep.mubr.bf16.mxu0 0
    %463 = vmatmul.mubr.bf16.gmra.mrb[0].mxu0 %v63
    %v464 = vpop.f32.mrb[0].mxu0
    %v465 = vadd.f32 0.0, %v464
    %v466 = vpop.f32.mrb[0].mxu0
    %v467 = vpop.f32.mrb[0].mxu0
    %v468 = vpop.f32.mrb[0].mxu0
    %469 = vdwg.mxu0
    %v470 = vpack.c.bf16 %v465, %v465
    %v472 = vsel %vm61, %v470, 0
    %474 = vmatprep.subr.bf16.mxu0 0
    %475 = vmatpush1.bf16.msra.mxu0 %v110
    %476 = vmatprep.subr.bf16.mxu0 0
    %477 = vmatpush1.bf16.msra.mxu0 0
    %478 = vmatprep.subr.bf16.mxu0 0
    %479 = vmatpush1.bf16.msra.mxu0 0
    %480 = vmatprep.subr.bf16.mxu0 0
    %481 = vmatpush1.bf16.msra.mxu0 0
    %482 = vmatprep.subr.bf16.mxu0 0
    %483 = vmatpush1.bf16.msra.mxu0 0
    %484 = vmatprep.subr.bf16.mxu0 0
    %485 = vmatpush1.bf16.msra.mxu0 0
    %486 = vmatprep.subr.bf16.mxu0 0
    %487 = vmatpush1.bf16.msra.mxu0 0
    %488 = vmatprep.subr.bf16.mxu0 0
    %489 = vmatpush1.bf16.msra.mxu0 0
    %490 = vmatprep.subr.bf16.mxu0 0
    %491 = vmatpush1.bf16.msra.mxu0 0
    %492 = vmatprep.subr.bf16.mxu0 0
    %493 = vmatpush1.bf16.msra.mxu0 0
    %494 = vmatprep.subr.bf16.mxu0 0
    %495 = vmatpush1.bf16.msra.mxu0 0
    %496 = vmatprep.subr.bf16.mxu0 0
    %497 = vmatpush1.bf16.msra.mxu0 0
    %498 = vmatprep.subr.bf16.mxu0 0
    %499 = vmatpush1.bf16.msra.mxu0 0
    %500 = vmatprep.subr.bf16.mxu0 0
    %501 = vmatpush1.bf16.msra.mxu0 0
    %502 = vmatprep.subr.bf16.mxu0 0
    %503 = vmatpush1.bf16.msra.mxu0 0
    %504 = vmatprep.subr.bf16.mxu0 0
    %505 = vmatpush1.bf16.msra.mxu0 0
    %506 = vmatprep.mubr.bf16.mxu0 0
    %507 = vmatmul.mubr.bf16.gmra.mrb[0].mxu0 %v472
    %v508 = vpop.f32.mrb[0].mxu0
    %v509 = vadd.f32 0.0, %v508
    %v510 = vpop.f32.mrb[0].mxu0
    %v511 = vpop.f32.mrb[0].mxu0
    %v512 = vpop.f32.mrb[0].mxu0
    %513 = vdwg.mxu0
    %s514 = scalar_lea.vmem [#allocation8], 32
    %515 = vst [vmem:[%s514] sm:$0xff] %v509
    %s516 = scalar_lea.vmem [#allocation2], 80
    %v517 = vld [vmem:[%s516] sm:$0xff]
    %v518 = vld [vmem:[%s516 + $0x8] sm:$0xff]
    %v519 = vpack.c.bf16 %v518, %v517
    %520 = vmatprep.subr.bf16.mxu0 0
    %521 = vmatpush1.bf16.msra.mxu0 %v519
    %522 = vmatprep.subr.bf16.mxu0 0
    %523 = vmatpush1.bf16.msra.mxu0 0
    %524 = vmatprep.subr.bf16.mxu0 0
    %525 = vmatpush1.bf16.msra.mxu0 0
    %526 = vmatprep.subr.bf16.mxu0 0
    %527 = vmatpush1.bf16.msra.mxu0 0
    %528 = vmatprep.subr.bf16.mxu0 0
    %529 = vmatpush1.bf16.msra.mxu0 0
    %530 = vmatprep.subr.bf16.mxu0 0
    %531 = vmatpush1.bf16.msra.mxu0 0
    %532 = vmatprep.subr.bf16.mxu0 0
    %533 = vmatpush1.bf16.msra.mxu0 0
    %534 = vmatprep.subr.bf16.mxu0 0
    %535 = vmatpush1.bf16.msra.mxu0 0
    %536 = vmatprep.subr.bf16.mxu0 0
    %537 = vmatpush1.bf16.msra.mxu0 0
    %538 = vmatprep.subr.bf16.mxu0 0
    %539 = vmatpush1.bf16.msra.mxu0 0
    %540 = vmatprep.subr.bf16.mxu0 0
    %541 = vmatpush1.bf16.msra.mxu0 0
    %542 = vmatprep.subr.bf16.mxu0 0
    %543 = vmatpush1.bf16.msra.mxu0 0
    %544 = vmatprep.subr.bf16.mxu0 0
    %545 = vmatpush1.bf16.msra.mxu0 0
    %546 = vmatprep.subr.bf16.mxu0 0
    %547 = vmatpush1.bf16.msra.mxu0 0
    %548 = vmatprep.subr.bf16.mxu0 0
    %549 = vmatpush1.bf16.msra.mxu0 0
    %550 = vmatprep.subr.bf16.mxu0 0
    %551 = vmatpush1.bf16.msra.mxu0 0
    %552 = vmatprep.mubr.bf16.mxu0 0
    %553 = vmatmul.mubr.bf16.gmra.mrb[0].mxu0 %v63
    %v554 = vpop.f32.mrb[0].mxu0
    %v555 = vadd.f32 0.0, %v554
    %v556 = vpop.f32.mrb[0].mxu0
    %v557 = vpop.f32.mrb[0].mxu0
    %v558 = vpop.f32.mrb[0].mxu0
    %559 = vdwg.mxu0
    %v560 = vpack.c.bf16 %v555, %v555
    %v562 = vsel %vm61, %v560, 0
    %564 = vmatprep.subr.bf16.mxu0 0
    %565 = vmatpush1.bf16.msra.mxu0 %v110
    %566 = vmatprep.subr.bf16.mxu0 0
    %567 = vmatpush1.bf16.msra.mxu0 0
    %568 = vmatprep.subr.bf16.mxu0 0
    %569 = vmatpush1.bf16.msra.mxu0 0
    %570 = vmatprep.subr.bf16.mxu0 0
    %571 = vmatpush1.bf16.msra.mxu0 0
    %572 = vmatprep.subr.bf16.mxu0 0
    %573 = vmatpush1.bf16.msra.mxu0 0
    %574 = vmatprep.subr.bf16.mxu0 0
    %575 = vmatpush1.bf16.msra.mxu0 0
    %576 = vmatprep.subr.bf16.mxu0 0
    %577 = vmatpush1.bf16.msra.mxu0 0
    %578 = vmatprep.subr.bf16.mxu0 0
    %579 = vmatpush1.bf16.msra.mxu0 0
    %580 = vmatprep.subr.bf16.mxu0 0
    %581 = vmatpush1.bf16.msra.mxu0 0
    %582 = vmatprep.subr.bf16.mxu0 0
    %583 = vmatpush1.bf16.msra.mxu0 0
    %584 = vmatprep.subr.bf16.mxu0 0
    %585 = vmatpush1.bf16.msra.mxu0 0
    %586 = vmatprep.subr.bf16.mxu0 0
    %587 = vmatpush1.bf16.msra.mxu0 0
    %588 = vmatprep.subr.bf16.mxu0 0
    %589 = vmatpush1.bf16.msra.mxu0 0
    %590 = vmatprep.subr.bf16.mxu0 0
    %591 = vmatpush1.bf16.msra.mxu0 0
    %592 = vmatprep.subr.bf16.mxu0 0
    %593 = vmatpush1.bf16.msra.mxu0 0
    %594 = vmatprep.subr.bf16.mxu0 0
    %595 = vmatpush1.bf16.msra.mxu0 0
    %596 = vmatprep.mubr.bf16.mxu0 0
    %597 = vmatmul.mubr.bf16.gmra.mrb[0].mxu0 %v562
    %v598 = vpop.f32.mrb[0].mxu0
    %v599 = vadd.f32 0.0, %v598
    %v600 = vpop.f32.mrb[0].mxu0
    %v601 = vpop.f32.mrb[0].mxu0
    %v602 = vpop.f32.mrb[0].mxu0
    %603 = vdwg.mxu0
    %s604 = scalar_lea.vmem [#allocation8], 40
    %605 = vst [vmem:[%s604] sm:$0xff] %v599
    // Predicated region
    $region26: #{tpu_custom_call.1} parent=1 // pred_check
      _
    $region27: #{tpu_custom_call.1} parent=1 // pred_check_branch
      %607 = sbr.rel (0) target = $region29
    $region28: #{tpu_custom_call.1} parent=1 // pred_region
      %s609 = ssub.s32 768, 768
      %610 = vsyncadd [#allocation4], %s609
      %s611 = sshll.u32 [#allocation8], 4
      %s612 = int_to_ptr.vmem [resolvable:$true] %s611
      %617 = dma.vmem_to_hbm [thread:$0]  %s612, 768, %s3, [#allocation4], 128, 128, 8
    $region29: #{tpu_custom_call.1} parent=1 // pred_fallthru
      _
    // Predicated region
    $region30: #{tpu_custom_call.1} parent=1 // pred_check
      _
    $region31: #{tpu_custom_call.1} parent=1 // pred_check_branch
      %619 = sbr.rel (0) target = $region33
    $region32: #{tpu_custom_call.1} parent=1 // pred_region
      %620 = dma.done [#allocation4], 768
    $region33: #{tpu_custom_call.1} parent=1 // pred_fallthru
      _
    %621 = vsyncpa [#allocation3], 1
    %622 = vsyncpa [#allocation6], 1
    %623 = vsyncpa [#allocation4], 1

</llo_original>
